<compile_context>
chip_gen: v7x
topology: tpu7x:2x2x1
jax: 0.10.0
libtpu: 0.0.40
codegen_flags: <defaults>
</compile_context>

<pallas_src>
import math

import jax
import jax.numpy as jnp
from jax.experimental import pallas as pl
from jax.experimental.pallas import tpu as pltpu


def _largest_divisor_leq(n, cap):
    for d in range(min(n, cap), 0, -1):
        if n % d == 0:
            return d
    return 1


def _make_encoder_kernel(num_layers, hidden_size, time_chunk, batch_tile, feat):
    H = hidden_size
    Tc = time_chunk
    TB = batch_tile
    F = feat

    def kernel(x_ref, *refs):
        w_refs = refs[: 3 * num_layers]
        out_ref = refs[3 * num_layers]
        h_scr = refs[3 * num_layers + 1]
        c_scr = refs[3 * num_layers + 2]

        tc = pl.program_id(1)

        @pl.when(tc == 0)
        def _init():
            h_scr[...] = jnp.zeros_like(h_scr)
            c_scr[...] = jnp.zeros_like(c_scr)

        # Whole time-chunk of input, flattened to a lane-friendly 2-D slab.
        seq2d = x_ref[...].astype(jnp.float32).reshape(Tc * TB, F)

        # Layer-major: layer l at step t only needs layer l-1 at step t and
        # layer l at step t-1, so finishing layer l-1 for the whole chunk
        # before starting layer l preserves exact recurrence semantics.
        for l in range(num_layers):
            w_ih = w_refs[3 * l][...]
            w_hh = w_refs[3 * l + 1][...]
            bias = w_refs[3 * l + 2][...]

            # Hoisted input projection: ONE big matmul (+ bias) per chunk.
            gates_x = (
                jnp.dot(seq2d, w_ih, preferred_element_type=jnp.float32) + bias
            )

            h = h_scr[l]
            c = c_scr[l]
            outs = []
            # Serial recurrence over the chunk (unrolled; Tc is small/static).
            for t in range(Tc):
                g_t = gates_x[t * TB:(t + 1) * TB, :] + jnp.dot(
                    h, w_hh, preferred_element_type=jnp.float32)
                # Columns are pre-ordered [i | f | o | g] wrapper-side:
                # one wide sigmoid over 3H lanes + one tanh over H lanes.
                sig = jax.nn.sigmoid(g_t[:, : 3 * H])
                i_g = sig[:, 0 * H:1 * H]
                f_g = sig[:, 1 * H:2 * H]
                o_g = sig[:, 2 * H:3 * H]
                g_g = jnp.tanh(g_t[:, 3 * H:])
                c = f_g * c + i_g * g_g
                h = o_g * jnp.tanh(c)
                outs.append(h)
            h_scr[l] = h
            c_scr[l] = c
            # TODO(synk): PyTorch applies dropout between layers in train mode
            # only; this forward is inference-mode (dropout == identity).
            if l + 1 < num_layers:
                seq2d = jnp.concatenate(outs, axis=0)  # (Tc*TB, H)

        @pl.when(tc == pl.num_programs(1) - 1)
        def _emit():
            out_ref[...] = h_scr[num_layers - 1].astype(out_ref.dtype)

    return kernel


def encoder_forward(x, layer_params, *, hidden_size, batch_tile=None,
                    max_time_chunk=32, interpret=False):
    """LSTM encoder forward.

    x: [T, B, F]  (seq_len, batch, number_of_features)
    layer_params: list of (w_ih [in_dim, 4H], w_hh [H, 4H], b [1, 4H]) per
        layer, gate columns in PyTorch order [i|f|g|o].
    returns: last layer's final hidden state, shape [B, H]
    """
    T, B, F = x.shape
    H = hidden_size
    num_layers = len(layer_params)

    # --- batch padding / tiling ------------------------------------------
    B_pad = ((B + 7) // 8) * 8                     # sublane granularity (f32)
    if batch_tile is None:
        if B_pad <= 8:
            batch_tile = B_pad
        else:
            # >= 2 tiles so the 'parallel' batch axis can use a 2nd TC (v7x).
            half = -(-B_pad // 2)
            batch_tile = min(128, ((half + 7) // 8) * 8)
    TB = batch_tile
    n_btiles = pl.cdiv(B_pad, TB)
    B_pad = n_btiles * TB                          # no partial batch blocks
    if B_pad != B:
        x = jnp.pad(x, ((0, 0), (0, B_pad - B), (0, 0)))

    # --- time chunking -----------------------------------------------------
    Tc = _largest_divisor_leq(T, max_time_chunk)
    n_tchunks = T // Tc

    # --- wrapper-side gate-column reorder [i|f|g|o] -> [i|f|o|g] ------------
    def _reorder(w):
        return jnp.concatenate(
            [w[..., : 2 * H], w[..., 3 * H: 4 * H], w[..., 2 * H: 3 * H]],
            axis=-1)

    const_map = lambda b, t: (0, 0)
    in_specs = [pl.BlockSpec((Tc, TB, F), lambda b, t: (t, b, 0))]
    flat_params = []
    for (w_ih, w_hh, bias) in layer_params:
        w_ih_r, w_hh_r, bias_r = _reorder(w_ih), _reorder(w_hh), _reorder(bias)
        in_specs.append(pl.BlockSpec(w_ih_r.shape, const_map))
        in_specs.append(pl.BlockSpec(w_hh_r.shape, const_map))
        in_specs.append(pl.BlockSpec(bias_r.shape, const_map))
        flat_params += [w_ih_r, w_hh_r, bias_r]

    out_specs = pl.BlockSpec((TB, H), lambda b, t: (b, 0))

    scratch_shapes = [
        pltpu.VMEM((num_layers, TB, H), jnp.float32),  # h state per layer
        pltpu.VMEM((num_layers, TB, H), jnp.float32),  # c state per layer
    ]

    # --- VMEM budget (includes default 2x buffering of pipelined blocks) ----
    bpe = x.dtype.itemsize
    w_bytes = sum(int(w.size) * w.dtype.itemsize for w in flat_params)
    x_chunk_bytes = Tc * TB * F * bpe
    out_bytes = TB * H * bpe
    state_bytes = 2 * num_layers * TB * H * 4
    stage_bytes = Tc * TB * 4 * H * 4              # gates_x per layer (f32)
    est = (2 * w_bytes + 2 * x_chunk_bytes + 2 * out_bytes
           + state_bytes + 2 * stage_bytes)
    cp_kwargs = dict(dimension_semantics=("parallel", "arbitrary"))
    if est > 16 * 1024 * 1024:
        cp_kwargs["vmem_limit_bytes"] = min(int(est * 1.25), 48 * 1024 * 1024)

    kernel = _make_encoder_kernel(num_layers, H, Tc, TB, F)
    out = pl.pallas_call(
        kernel,
        out_shape=jax.ShapeDtypeStruct((B_pad, H), x.dtype),
        grid_spec=pltpu.PrefetchScalarGridSpec(
            num_scalar_prefetch=0,
            grid=(n_btiles, n_tchunks),
            in_specs=in_specs,
            out_specs=out_specs,
            scratch_shapes=scratch_shapes,
        ),
        compiler_params=pltpu.CompilerParams(**cp_kwargs),
        interpret=interpret,
    )(x, *flat_params)
    return out[:B]


def init_encoder_params(key, number_of_features, hidden_size, hidden_layer_depth,
                        dtype=jnp.float32):
    """nn.LSTM-style init U(-1/sqrt(H), 1/sqrt(H)).  Weights stored pre-transposed
    as [in_dim, 4H] with PyTorch gate order [i|f|g|o]; the two biases are
    pre-summed into a single [1, 4H] row."""
    H = hidden_size
    k = 1.0 / math.sqrt(H)
    params = []
    for layer in range(hidden_layer_depth):
        in_dim = number_of_features if layer == 0 else H
        key, k1, k2, k3, k4 = jax.random.split(key, 5)
        w_ih = jax.random.uniform(k1, (in_dim, 4 * H), dtype, -k, k)
        w_hh = jax.random.uniform(k2, (H, 4 * H), dtype, -k, k)
        b_ih = jax.random.uniform(k3, (1, 4 * H), dtype, -k, k)
        b_hh = jax.random.uniform(k4, (1, 4 * H), dtype, -k, k)
        params.append((w_ih, w_hh, b_ih + b_hh))
    return params


def encoder_reference(x, layer_params, hidden_size):
    """Pure-JAX reference of the same LSTM forward (inference mode)."""
    T, B, _ = x.shape
    H = hidden_size
    num_layers = len(layer_params)
    h = [jnp.zeros((B, H), jnp.float32) for _ in range(num_layers)]
    c = [jnp.zeros((B, H), jnp.float32) for _ in range(num_layers)]
    for t in range(T):
        inp = x[t].astype(jnp.float32)
        for l, (w_ih, w_hh, b) in enumerate(layer_params):
            gates = inp @ w_ih + h[l] @ w_hh + b
            i_g = jax.nn.sigmoid(gates[:, 0 * H:1 * H])
            f_g = jax.nn.sigmoid(gates[:, 1 * H:2 * H])
            g_g = jnp.tanh(gates[:, 2 * H:3 * H])
            o_g = jax.nn.sigmoid(gates[:, 3 * H:4 * H])
            c[l] = f_g * c[l] + i_g * g_g
            h[l] = o_g * jnp.tanh(c[l])
            inp = h[l]
    return h[-1].astype(x.dtype)


if __name__ == "__main__":
    key = jax.random.PRNGKey(0)
    k_params, k_x = jax.random.split(key)

    # Small shapes consistent with the module's forward:
    # x: (sequence_length, batch_size, number_of_features)
    seq_len = 8
    batch = 2
    number_of_features = 16
    hidden_size = 32
    hidden_layer_depth = 2
    # dropout in the original ctor only acts between layers in train mode; this
    # forward is deterministic (eval-mode), so it is the identity.

    params = init_encoder_params(k_params, number_of_features, hidden_size,
                                 hidden_layer_depth)
    x = jax.random.normal(k_x, (seq_len, batch, number_of_features), jnp.float32)

    # Pallas kernel forward: returns last hidden state of the last layer.
    h_end = encoder_forward(x, params, hidden_size=hidden_size)
    h_end = jax.block_until_ready(h_end)

    # Pure-JAX reference check.
    h_ref = encoder_reference(x, params, hidden_size)
    assert h_end.shape == (batch, hidden_size)
    assert jnp.allclose(h_end, h_ref, atol=1e-4, rtol=1e-4), (
        f"mismatch: max abs err {float(jnp.max(jnp.abs(h_end - h_ref)))}")

    print("KERNEL_OK")
</pallas_src>

<mosaic_0001>
module attributes {stable_mosaic.version = 11 : i64} {
  func.func @kernel(%arg0: i32, %arg1: i32, %arg2: memref<8x8x16xf32, #tpu.memory_space<vmem>>, %arg3: memref<16x128xf32, #tpu.memory_space<vmem>>, %arg4: memref<32x128xf32, #tpu.memory_space<vmem>>, %arg5: memref<1x128xf32, #tpu.memory_space<vmem>>, %arg6: memref<32x128xf32, #tpu.memory_space<vmem>>, %arg7: memref<32x128xf32, #tpu.memory_space<vmem>>, %arg8: memref<1x128xf32, #tpu.memory_space<vmem>>, %arg9: memref<8x32xf32, #tpu.memory_space<vmem>>, %arg10: memref<2x8x32xf32, #tpu.memory_space<vmem>>, %arg11: memref<2x8x32xf32, #tpu.memory_space<vmem>>) attributes {dimension_semantics = [#tpu.dimension_semantics<parallel>, #tpu.dimension_semantics<arbitrary>], iteration_bounds = array<i64: 1, 1>, scalar_prefetch = 0 : i64, scratch_operands = 2 : i64, tpu.core_type = #tpu.core_type<tc>, window_params = [{transform_indices = @transform_0, window_bounds = array<i64: 8, 8, 16>}, {pipeline_mode = #tpu.pipeline_mode<synchronous>, transform_indices = @transform_1, window_bounds = array<i64: 16, 128>}, {pipeline_mode = #tpu.pipeline_mode<synchronous>, transform_indices = @transform_2, window_bounds = array<i64: 32, 128>}, {pipeline_mode = #tpu.pipeline_mode<synchronous>, transform_indices = @transform_3, window_bounds = array<i64: 1, 128>}, {pipeline_mode = #tpu.pipeline_mode<synchronous>, transform_indices = @transform_4, window_bounds = array<i64: 32, 128>}, {pipeline_mode = #tpu.pipeline_mode<synchronous>, transform_indices = @transform_5, window_bounds = array<i64: 32, 128>}, {pipeline_mode = #tpu.pipeline_mode<synchronous>, transform_indices = @transform_6, window_bounds = array<i64: 1, 128>}, {transform_indices = @transform_7, window_bounds = array<i64: 8, 32>}]} {
    %c0_i32 = arith.constant 0 : i32
    %0 = arith.cmpi eq, %arg1, %c0_i32 : i32
    %1 = arith.extui %0 : i1 to i32
    %c0_i32_0 = arith.constant 0 : i32
    %2 = arith.cmpi ne, %1, %c0_i32_0 : i32
    scf.if %2 {
      %cst_73 = arith.constant 0.000000e+00 : f32
      %345 = vector.broadcast %cst_73 : f32 to vector<2x8x32xf32>
      %c0_74 = arith.constant 0 : index
      %c0_75 = arith.constant 0 : index
      %c0_76 = arith.constant 0 : index
      %346 = vector.load %arg10[%c0_74, %c0_75, %c0_76] : memref<2x8x32xf32, #tpu.memory_space<vmem>>, vector<2x8x32xf32>
      tpu.vector_store %arg10[%c0_74, %c0_75, %c0_76], %345 {strides = array<i32>} : memref<2x8x32xf32, #tpu.memory_space<vmem>>, vector<2x8x32xf32>,
      %cst_77 = arith.constant 0.000000e+00 : f32
      %347 = vector.broadcast %cst_77 : f32 to vector<2x8x32xf32>
      %c0_78 = arith.constant 0 : index
      %c0_79 = arith.constant 0 : index
      %c0_80 = arith.constant 0 : index
      %348 = vector.load %arg11[%c0_78, %c0_79, %c0_80] : memref<2x8x32xf32, #tpu.memory_space<vmem>>, vector<2x8x32xf32>
      tpu.vector_store %arg11[%c0_78, %c0_79, %c0_80], %347 {strides = array<i32>} : memref<2x8x32xf32, #tpu.memory_space<vmem>>, vector<2x8x32xf32>,
    } else {
    }
    %c0 = arith.constant 0 : index
    %c0_1 = arith.constant 0 : index
    %c0_2 = arith.constant 0 : index
    %3 = vector.load %arg2[%c0, %c0_1, %c0_2] : memref<8x8x16xf32, #tpu.memory_space<vmem>>, vector<8x8x16xf32>
    %4 = vector.shape_cast %3 : vector<8x8x16xf32> to vector<64x16xf32>
    %c0_3 = arith.constant 0 : index
    %c0_4 = arith.constant 0 : index
    %5 = vector.load %arg3[%c0_3, %c0_4] : memref<16x128xf32, #tpu.memory_space<vmem>>, vector<16x128xf32>
    %c0_5 = arith.constant 0 : index
    %c0_6 = arith.constant 0 : index
    %6 = vector.load %arg4[%c0_5, %c0_6] : memref<32x128xf32, #tpu.memory_space<vmem>>, vector<32x128xf32>
    %c0_7 = arith.constant 0 : index
    %c0_8 = arith.constant 0 : index
    %7 = vector.load %arg5[%c0_7, %c0_8] : memref<1x128xf32, #tpu.memory_space<vmem>>, vector<1x128xf32>
    %cst = arith.constant dense<0.000000e+00> : vector<64x128xf32>
    %8 = tpu.matmul %4, %5, %cst {dimension_numbers = #tpu.dot_dimension_numbers<[1], [0], [0], [1], [0, 0, 1, 1], [], []>} : vector<64x16xf32>, vector<16x128xf32>, vector<64x128xf32> -> vector<64x128xf32>
    %9 = vector.broadcast %7 : vector<1x128xf32> to vector<64x128xf32>
    %10 = arith.addf %8, %9 : vector<64x128xf32>
    %c0_9 = arith.constant 0 : index
    %c0_10 = arith.constant 0 : index
    %c0_11 = arith.constant 0 : index
    %11 = vector.load %arg10[%c0_9, %c0_10, %c0_11] : memref<2x8x32xf32, #tpu.memory_space<vmem>>, vector<1x8x32xf32>
    %12 = vector.shape_cast %11 : vector<1x8x32xf32> to vector<8x32xf32>
    %c0_12 = arith.constant 0 : index
    %c0_13 = arith.constant 0 : index
    %c0_14 = arith.constant 0 : index
    %13 = vector.load %arg11[%c0_12, %c0_13, %c0_14] : memref<2x8x32xf32, #tpu.memory_space<vmem>>, vector<1x8x32xf32>
    %14 = vector.shape_cast %13 : vector<1x8x32xf32> to vector<8x32xf32>
    %15 = vector.extract_strided_slice %10 {offsets = [0, 0], sizes = [8, 128], strides = [1, 1]} : vector<64x128xf32> to vector<8x128xf32>
    %cst_15 = arith.constant dense<0.000000e+00> : vector<8x128xf32>
    %16 = tpu.matmul %12, %6, %cst_15 {dimension_numbers = #tpu.dot_dimension_numbers<[1], [0], [0], [1], [0, 0, 1, 1], [], []>} : vector<8x32xf32>, vector<32x128xf32>, vector<8x128xf32> -> vector<8x128xf32>
    %17 = arith.addf %15, %16 : vector<8x128xf32>
    %18 = vector.extract_strided_slice %17 {offsets = [0, 0], sizes = [8, 96], strides = [1, 1]} : vector<8x128xf32> to vector<8x96xf32>
    %19 = arith.negf %18 : vector<8x96xf32>
    %20 = math.exp %19 : vector<8x96xf32>
    %cst_16 = arith.constant 1.000000e+00 : f32
    %21 = vector.broadcast %cst_16 : f32 to vector<8x96xf32>
    %22 = arith.addf %21, %20 : vector<8x96xf32>
    %23 = arith.divf %21, %22 : vector<8x96xf32>
    %24 = vector.extract_strided_slice %23 {offsets = [0, 0], sizes = [8, 32], strides = [1, 1]} : vector<8x96xf32> to vector<8x32xf32>
    %25 = vector.extract_strided_slice %23 {offsets = [0, 32], sizes = [8, 32], strides = [1, 1]} : vector<8x96xf32> to vector<8x32xf32>
    %26 = vector.extract_strided_slice %23 {offsets = [0, 64], sizes = [8, 32], strides = [1, 1]} : vector<8x96xf32> to vector<8x32xf32>
    %27 = vector.extract_strided_slice %17 {offsets = [0, 96], sizes = [8, 32], strides = [1, 1]} : vector<8x128xf32> to vector<8x32xf32>
    %28 = math.tanh %27 : vector<8x32xf32>
    %29 = arith.mulf %25, %14 : vector<8x32xf32>
    %30 = arith.mulf %24, %28 : vector<8x32xf32>
    %31 = arith.addf %29, %30 : vector<8x32xf32>
    %32 = math.tanh %31 : vector<8x32xf32>
    %33 = arith.mulf %26, %32 : vector<8x32xf32>
    %34 = vector.extract_strided_slice %10 {offsets = [8, 0], sizes = [8, 128], strides = [1, 1]} : vector<64x128xf32> to vector<8x128xf32>
    %cst_17 = arith.constant dense<0.000000e+00> : vector<8x128xf32>
    %35 = tpu.matmul %33, %6, %cst_17 {dimension_numbers = #tpu.dot_dimension_numbers<[1], [0], [0], [1], [0, 0, 1, 1], [], []>} : vector<8x32xf32>, vector<32x128xf32>, vector<8x128xf32> -> vector<8x128xf32>
    %36 = arith.addf %34, %35 : vector<8x128xf32>
    %37 = vector.extract_strided_slice %36 {offsets = [0, 0], sizes = [8, 96], strides = [1, 1]} : vector<8x128xf32> to vector<8x96xf32>
    %38 = arith.negf %37 : vector<8x96xf32>
    %39 = math.exp %38 : vector<8x96xf32>
    %cst_18 = arith.constant 1.000000e+00 : f32
    %40 = vector.broadcast %cst_18 : f32 to vector<8x96xf32>
    %41 = arith.addf %40, %39 : vector<8x96xf32>
    %42 = arith.divf %40, %41 : vector<8x96xf32>
    %43 = vector.extract_strided_slice %42 {offsets = [0, 0], sizes = [8, 32], strides = [1, 1]} : vector<8x96xf32> to vector<8x32xf32>
    %44 = vector.extract_strided_slice %42 {offsets = [0, 32], sizes = [8, 32], strides = [1, 1]} : vector<8x96xf32> to vector<8x32xf32>
    %45 = vector.extract_strided_slice %42 {offsets = [0, 64], sizes = [8, 32], strides = [1, 1]} : vector<8x96xf32> to vector<8x32xf32>
    %46 = vector.extract_strided_slice %36 {offsets = [0, 96], sizes = [8, 32], strides = [1, 1]} : vector<8x128xf32> to vector<8x32xf32>
    %47 = math.tanh %46 : vector<8x32xf32>
    %48 = arith.mulf %44, %31 : vector<8x32xf32>
    %49 = arith.mulf %43, %47 : vector<8x32xf32>
    %50 = arith.addf %48, %49 : vector<8x32xf32>
    %51 = math.tanh %50 : vector<8x32xf32>
    %52 = arith.mulf %45, %51 : vector<8x32xf32>
    %53 = vector.extract_strided_slice %10 {offsets = [16, 0], sizes = [8, 128], strides = [1, 1]} : vector<64x128xf32> to vector<8x128xf32>
    %cst_19 = arith.constant dense<0.000000e+00> : vector<8x128xf32>
    %54 = tpu.matmul %52, %6, %cst_19 {dimension_numbers = #tpu.dot_dimension_numbers<[1], [0], [0], [1], [0, 0, 1, 1], [], []>} : vector<8x32xf32>, vector<32x128xf32>, vector<8x128xf32> -> vector<8x128xf32>
    %55 = arith.addf %53, %54 : vector<8x128xf32>
    %56 = vector.extract_strided_slice %55 {offsets = [0, 0], sizes = [8, 96], strides = [1, 1]} : vector<8x128xf32> to vector<8x96xf32>
    %57 = arith.negf %56 : vector<8x96xf32>
    %58 = math.exp %57 : vector<8x96xf32>
    %cst_20 = arith.constant 1.000000e+00 : f32
    %59 = vector.broadcast %cst_20 : f32 to vector<8x96xf32>
    %60 = arith.addf %59, %58 : vector<8x96xf32>
    %61 = arith.divf %59, %60 : vector<8x96xf32>
    %62 = vector.extract_strided_slice %61 {offsets = [0, 0], sizes = [8, 32], strides = [1, 1]} : vector<8x96xf32> to vector<8x32xf32>
    %63 = vector.extract_strided_slice %61 {offsets = [0, 32], sizes = [8, 32], strides = [1, 1]} : vector<8x96xf32> to vector<8x32xf32>
    %64 = vector.extract_strided_slice %61 {offsets = [0, 64], sizes = [8, 32], strides = [1, 1]} : vector<8x96xf32> to vector<8x32xf32>
    %65 = vector.extract_strided_slice %55 {offsets = [0, 96], sizes = [8, 32], strides = [1, 1]} : vector<8x128xf32> to vector<8x32xf32>
    %66 = math.tanh %65 : vector<8x32xf32>
    %67 = arith.mulf %63, %50 : vector<8x32xf32>
    %68 = arith.mulf %62, %66 : vector<8x32xf32>
    %69 = arith.addf %67, %68 : vector<8x32xf32>
    %70 = math.tanh %69 : vector<8x32xf32>
    %71 = arith.mulf %64, %70 : vector<8x32xf32>
    %72 = vector.extract_strided_slice %10 {offsets = [24, 0], sizes = [8, 128], strides = [1, 1]} : vector<64x128xf32> to vector<8x128xf32>
    %cst_21 = arith.constant dense<0.000000e+00> : vector<8x128xf32>
    %73 = tpu.matmul %71, %6, %cst_21 {dimension_numbers = #tpu.dot_dimension_numbers<[1], [0], [0], [1], [0, 0, 1, 1], [], []>} : vector<8x32xf32>, vector<32x128xf32>, vector<8x128xf32> -> vector<8x128xf32>
    %74 = arith.addf %72, %73 : vector<8x128xf32>
    %75 = vector.extract_strided_slice %74 {offsets = [0, 0], sizes = [8, 96], strides = [1, 1]} : vector<8x128xf32> to vector<8x96xf32>
    %76 = arith.negf %75 : vector<8x96xf32>
    %77 = math.exp %76 : vector<8x96xf32>
    %cst_22 = arith.constant 1.000000e+00 : f32
    %78 = vector.broadcast %cst_22 : f32 to vector<8x96xf32>
    %79 = arith.addf %78, %77 : vector<8x96xf32>
    %80 = arith.divf %78, %79 : vector<8x96xf32>
    %81 = vector.extract_strided_slice %80 {offsets = [0, 0], sizes = [8, 32], strides = [1, 1]} : vector<8x96xf32> to vector<8x32xf32>
    %82 = vector.extract_strided_slice %80 {offsets = [0, 32], sizes = [8, 32], strides = [1, 1]} : vector<8x96xf32> to vector<8x32xf32>
    %83 = vector.extract_strided_slice %80 {offsets = [0, 64], sizes = [8, 32], strides = [1, 1]} : vector<8x96xf32> to vector<8x32xf32>
    %84 = vector.extract_strided_slice %74 {offsets = [0, 96], sizes = [8, 32], strides = [1, 1]} : vector<8x128xf32> to vector<8x32xf32>
    %85 = math.tanh %84 : vector<8x32xf32>
    %86 = arith.mulf %82, %69 : vector<8x32xf32>
    %87 = arith.mulf %81, %85 : vector<8x32xf32>
    %88 = arith.addf %86, %87 : vector<8x32xf32>
    %89 = math.tanh %88 : vector<8x32xf32>
    %90 = arith.mulf %83, %89 : vector<8x32xf32>
    %91 = vector.extract_strided_slice %10 {offsets = [32, 0], sizes = [8, 128], strides = [1, 1]} : vector<64x128xf32> to vector<8x128xf32>
    %cst_23 = arith.constant dense<0.000000e+00> : vector<8x128xf32>
    %92 = tpu.matmul %90, %6, %cst_23 {dimension_numbers = #tpu.dot_dimension_numbers<[1], [0], [0], [1], [0, 0, 1, 1], [], []>} : vector<8x32xf32>, vector<32x128xf32>, vector<8x128xf32> -> vector<8x128xf32>
    %93 = arith.addf %91, %92 : vector<8x128xf32>
    %94 = vector.extract_strided_slice %93 {offsets = [0, 0], sizes = [8, 96], strides = [1, 1]} : vector<8x128xf32> to vector<8x96xf32>
    %95 = arith.negf %94 : vector<8x96xf32>
    %96 = math.exp %95 : vector<8x96xf32>
    %cst_24 = arith.constant 1.000000e+00 : f32
    %97 = vector.broadcast %cst_24 : f32 to vector<8x96xf32>
    %98 = arith.addf %97, %96 : vector<8x96xf32>
    %99 = arith.divf %97, %98 : vector<8x96xf32>
    %100 = vector.extract_strided_slice %99 {offsets = [0, 0], sizes = [8, 32], strides = [1, 1]} : vector<8x96xf32> to vector<8x32xf32>
    %101 = vector.extract_strided_slice %99 {offsets = [0, 32], sizes = [8, 32], strides = [1, 1]} : vector<8x96xf32> to vector<8x32xf32>
    %102 = vector.extract_strided_slice %99 {offsets = [0, 64], sizes = [8, 32], strides = [1, 1]} : vector<8x96xf32> to vector<8x32xf32>
    %103 = vector.extract_strided_slice %93 {offsets = [0, 96], sizes = [8, 32], strides = [1, 1]} : vector<8x128xf32> to vector<8x32xf32>
    %104 = math.tanh %103 : vector<8x32xf32>
    %105 = arith.mulf %101, %88 : vector<8x32xf32>
    %106 = arith.mulf %100, %104 : vector<8x32xf32>
    %107 = arith.addf %105, %106 : vector<8x32xf32>
    %108 = math.tanh %107 : vector<8x32xf32>
    %109 = arith.mulf %102, %108 : vector<8x32xf32>
    %110 = vector.extract_strided_slice %10 {offsets = [40, 0], sizes = [8, 128], strides = [1, 1]} : vector<64x128xf32> to vector<8x128xf32>
    %cst_25 = arith.constant dense<0.000000e+00> : vector<8x128xf32>
    %111 = tpu.matmul %109, %6, %cst_25 {dimension_numbers = #tpu.dot_dimension_numbers<[1], [0], [0], [1], [0, 0, 1, 1], [], []>} : vector<8x32xf32>, vector<32x128xf32>, vector<8x128xf32> -> vector<8x128xf32>
    %112 = arith.addf %110, %111 : vector<8x128xf32>
    %113 = vector.extract_strided_slice %112 {offsets = [0, 0], sizes = [8, 96], strides = [1, 1]} : vector<8x128xf32> to vector<8x96xf32>
    %114 = arith.negf %113 : vector<8x96xf32>
    %115 = math.exp %114 : vector<8x96xf32>
    %cst_26 = arith.constant 1.000000e+00 : f32
    %116 = vector.broadcast %cst_26 : f32 to vector<8x96xf32>
    %117 = arith.addf %116, %115 : vector<8x96xf32>
    %118 = arith.divf %116, %117 : vector<8x96xf32>
    %119 = vector.extract_strided_slice %118 {offsets = [0, 0], sizes = [8, 32], strides = [1, 1]} : vector<8x96xf32> to vector<8x32xf32>
    %120 = vector.extract_strided_slice %118 {offsets = [0, 32], sizes = [8, 32], strides = [1, 1]} : vector<8x96xf32> to vector<8x32xf32>
    %121 = vector.extract_strided_slice %118 {offsets = [0, 64], sizes = [8, 32], strides = [1, 1]} : vector<8x96xf32> to vector<8x32xf32>
    %122 = vector.extract_strided_slice %112 {offsets = [0, 96], sizes = [8, 32], strides = [1, 1]} : vector<8x128xf32> to vector<8x32xf32>
    %123 = math.tanh %122 : vector<8x32xf32>
    %124 = arith.mulf %120, %107 : vector<8x32xf32>
    %125 = arith.mulf %119, %123 : vector<8x32xf32>
    %126 = arith.addf %124, %125 : vector<8x32xf32>
    %127 = math.tanh %126 : vector<8x32xf32>
    %128 = arith.mulf %121, %127 : vector<8x32xf32>
    %129 = vector.extract_strided_slice %10 {offsets = [48, 0], sizes = [8, 128], strides = [1, 1]} : vector<64x128xf32> to vector<8x128xf32>
    %cst_27 = arith.constant dense<0.000000e+00> : vector<8x128xf32>
    %130 = tpu.matmul %128, %6, %cst_27 {dimension_numbers = #tpu.dot_dimension_numbers<[1], [0], [0], [1], [0, 0, 1, 1], [], []>} : vector<8x32xf32>, vector<32x128xf32>, vector<8x128xf32> -> vector<8x128xf32>
    %131 = arith.addf %129, %130 : vector<8x128xf32>
    %132 = vector.extract_strided_slice %131 {offsets = [0, 0], sizes = [8, 96], strides = [1, 1]} : vector<8x128xf32> to vector<8x96xf32>
    %133 = arith.negf %132 : vector<8x96xf32>
    %134 = math.exp %133 : vector<8x96xf32>
    %cst_28 = arith.constant 1.000000e+00 : f32
    %135 = vector.broadcast %cst_28 : f32 to vector<8x96xf32>
    %136 = arith.addf %135, %134 : vector<8x96xf32>
    %137 = arith.divf %135, %136 : vector<8x96xf32>
    %138 = vector.extract_strided_slice %137 {offsets = [0, 0], sizes = [8, 32], strides = [1, 1]} : vector<8x96xf32> to vector<8x32xf32>
    %139 = vector.extract_strided_slice %137 {offsets = [0, 32], sizes = [8, 32], strides = [1, 1]} : vector<8x96xf32> to vector<8x32xf32>
    %140 = vector.extract_strided_slice %137 {offsets = [0, 64], sizes = [8, 32], strides = [1, 1]} : vector<8x96xf32> to vector<8x32xf32>
    %141 = vector.extract_strided_slice %131 {offsets = [0, 96], sizes = [8, 32], strides = [1, 1]} : vector<8x128xf32> to vector<8x32xf32>
    %142 = math.tanh %141 : vector<8x32xf32>
    %143 = arith.mulf %139, %126 : vector<8x32xf32>
    %144 = arith.mulf %138, %142 : vector<8x32xf32>
    %145 = arith.addf %143, %144 : vector<8x32xf32>
    %146 = math.tanh %145 : vector<8x32xf32>
    %147 = arith.mulf %140, %146 : vector<8x32xf32>
    %148 = vector.extract_strided_slice %10 {offsets = [56, 0], sizes = [8, 128], strides = [1, 1]} : vector<64x128xf32> to vector<8x128xf32>
    %cst_29 = arith.constant dense<0.000000e+00> : vector<8x128xf32>
    %149 = tpu.matmul %147, %6, %cst_29 {dimension_numbers = #tpu.dot_dimension_numbers<[1], [0], [0], [1], [0, 0, 1, 1], [], []>} : vector<8x32xf32>, vector<32x128xf32>, vector<8x128xf32> -> vector<8x128xf32>
    %150 = arith.addf %148, %149 : vector<8x128xf32>
    %151 = vector.extract_strided_slice %150 {offsets = [0, 0], sizes = [8, 96], strides = [1, 1]} : vector<8x128xf32> to vector<8x96xf32>
    %152 = arith.negf %151 : vector<8x96xf32>
    %153 = math.exp %152 : vector<8x96xf32>
    %cst_30 = arith.constant 1.000000e+00 : f32
    %154 = vector.broadcast %cst_30 : f32 to vector<8x96xf32>
    %155 = arith.addf %154, %153 : vector<8x96xf32>
    %156 = arith.divf %154, %155 : vector<8x96xf32>
    %157 = vector.extract_strided_slice %156 {offsets = [0, 0], sizes = [8, 32], strides = [1, 1]} : vector<8x96xf32> to vector<8x32xf32>
    %158 = vector.extract_strided_slice %156 {offsets = [0, 32], sizes = [8, 32], strides = [1, 1]} : vector<8x96xf32> to vector<8x32xf32>
    %159 = vector.extract_strided_slice %156 {offsets = [0, 64], sizes = [8, 32], strides = [1, 1]} : vector<8x96xf32> to vector<8x32xf32>
    %160 = vector.extract_strided_slice %150 {offsets = [0, 96], sizes = [8, 32], strides = [1, 1]} : vector<8x128xf32> to vector<8x32xf32>
    %161 = math.tanh %160 : vector<8x32xf32>
    %162 = arith.mulf %158, %145 : vector<8x32xf32>
    %163 = arith.mulf %157, %161 : vector<8x32xf32>
    %164 = arith.addf %162, %163 : vector<8x32xf32>
    %165 = math.tanh %164 : vector<8x32xf32>
    %166 = arith.mulf %159, %165 : vector<8x32xf32>
    %c0_31 = arith.constant 0 : index
    %c0_32 = arith.constant 0 : index
    %c0_33 = arith.constant 0 : index
    %167 = vector.load %arg10[%c0_31, %c0_32, %c0_33] : memref<2x8x32xf32, #tpu.memory_space<vmem>>, vector<1x8x32xf32>
    %168 = vector.shape_cast %167 : vector<1x8x32xf32> to vector<8x32xf32>
    %169 = vector.shape_cast %166 : vector<8x32xf32> to vector<1x8x32xf32>
    tpu.vector_store %arg10[%c0_31, %c0_32, %c0_33], %169 {strides = array<i32>} : memref<2x8x32xf32, #tpu.memory_space<vmem>>, vector<1x8x32xf32>,
    %c0_34 = arith.constant 0 : index
    %c0_35 = arith.constant 0 : index
    %c0_36 = arith.constant 0 : index
    %170 = vector.load %arg11[%c0_34, %c0_35, %c0_36] : memref<2x8x32xf32, #tpu.memory_space<vmem>>, vector<1x8x32xf32>
    %171 = vector.shape_cast %170 : vector<1x8x32xf32> to vector<8x32xf32>
    %172 = vector.shape_cast %164 : vector<8x32xf32> to vector<1x8x32xf32>
    tpu.vector_store %arg11[%c0_34, %c0_35, %c0_36], %172 {strides = array<i32>} : memref<2x8x32xf32, #tpu.memory_space<vmem>>, vector<1x8x32xf32>,
    %173 = tpu.concatenate %33, %52, %71, %90, %109, %128, %147, %166 in 0 : vector<8x32xf32>, vector<8x32xf32>, vector<8x32xf32>, vector<8x32xf32>, vector<8x32xf32>, vector<8x32xf32>, vector<8x32xf32>, vector<8x32xf32> -> vector<64x32xf32>
    %c0_37 = arith.constant 0 : index
    %c0_38 = arith.constant 0 : index
    %174 = vector.load %arg6[%c0_37, %c0_38] : memref<32x128xf32, #tpu.memory_space<vmem>>, vector<32x128xf32>
    %c0_39 = arith.constant 0 : index
    %c0_40 = arith.constant 0 : index
    %175 = vector.load %arg7[%c0_39, %c0_40] : memref<32x128xf32, #tpu.memory_space<vmem>>, vector<32x128xf32>
    %c0_41 = arith.constant 0 : index
    %c0_42 = arith.constant 0 : index
    %176 = vector.load %arg8[%c0_41, %c0_42] : memref<1x128xf32, #tpu.memory_space<vmem>>, vector<1x128xf32>
    %cst_43 = arith.constant dense<0.000000e+00> : vector<64x128xf32>
    %177 = tpu.matmul %173, %174, %cst_43 {dimension_numbers = #tpu.dot_dimension_numbers<[1], [0], [0], [1], [0, 0, 1, 1], [], []>} : vector<64x32xf32>, vector<32x128xf32>, vector<64x128xf32> -> vector<64x128xf32>
    %178 = vector.broadcast %176 : vector<1x128xf32> to vector<64x128xf32>
    %179 = arith.addf %177, %178 : vector<64x128xf32>
    %c1 = arith.constant 1 : index
    %c0_44 = arith.constant 0 : index
    %c0_45 = arith.constant 0 : index
    %180 = vector.load %arg10[%c1, %c0_44, %c0_45] : memref<2x8x32xf32, #tpu.memory_space<vmem>>, vector<1x8x32xf32>
    %181 = vector.shape_cast %180 : vector<1x8x32xf32> to vector<8x32xf32>
    %c1_46 = arith.constant 1 : index
    %c0_47 = arith.constant 0 : index
    %c0_48 = arith.constant 0 : index
    %182 = vector.load %arg11[%c1_46, %c0_47, %c0_48] : memref<2x8x32xf32, #tpu.memory_space<vmem>>, vector<1x8x32xf32>
    %183 = vector.shape_cast %182 : vector<1x8x32xf32> to vector<8x32xf32>
    %184 = vector.extract_strided_slice %179 {offsets = [0, 0], sizes = [8, 128], strides = [1, 1]} : vector<64x128xf32> to vector<8x128xf32>
    %cst_49 = arith.constant dense<0.000000e+00> : vector<8x128xf32>
    %185 = tpu.matmul %181, %175, %cst_49 {dimension_numbers = #tpu.dot_dimension_numbers<[1], [0], [0], [1], [0, 0, 1, 1], [], []>} : vector<8x32xf32>, vector<32x128xf32>, vector<8x128xf32> -> vector<8x128xf32>
    %186 = arith.addf %184, %185 : vector<8x128xf32>
    %187 = vector.extract_strided_slice %186 {offsets = [0, 0], sizes = [8, 96], strides = [1, 1]} : vector<8x128xf32> to vector<8x96xf32>
    %188 = arith.negf %187 : vector<8x96xf32>
    %189 = math.exp %188 : vector<8x96xf32>
    %cst_50 = arith.constant 1.000000e+00 : f32
    %190 = vector.broadcast %cst_50 : f32 to vector<8x96xf32>
    %191 = arith.addf %190, %189 : vector<8x96xf32>
    %192 = arith.divf %190, %191 : vector<8x96xf32>
    %193 = vector.extract_strided_slice %192 {offsets = [0, 0], sizes = [8, 32], strides = [1, 1]} : vector<8x96xf32> to vector<8x32xf32>
    %194 = vector.extract_strided_slice %192 {offsets = [0, 32], sizes = [8, 32], strides = [1, 1]} : vector<8x96xf32> to vector<8x32xf32>
    %195 = vector.extract_strided_slice %192 {offsets = [0, 64], sizes = [8, 32], strides = [1, 1]} : vector<8x96xf32> to vector<8x32xf32>
    %196 = vector.extract_strided_slice %186 {offsets = [0, 96], sizes = [8, 32], strides = [1, 1]} : vector<8x128xf32> to vector<8x32xf32>
    %197 = math.tanh %196 : vector<8x32xf32>
    %198 = arith.mulf %194, %183 : vector<8x32xf32>
    %199 = arith.mulf %193, %197 : vector<8x32xf32>
    %200 = arith.addf %198, %199 : vector<8x32xf32>
    %201 = math.tanh %200 : vector<8x32xf32>
    %202 = arith.mulf %195, %201 : vector<8x32xf32>
    %203 = vector.extract_strided_slice %179 {offsets = [8, 0], sizes = [8, 128], strides = [1, 1]} : vector<64x128xf32> to vector<8x128xf32>
    %cst_51 = arith.constant dense<0.000000e+00> : vector<8x128xf32>
    %204 = tpu.matmul %202, %175, %cst_51 {dimension_numbers = #tpu.dot_dimension_numbers<[1], [0], [0], [1], [0, 0, 1, 1], [], []>} : vector<8x32xf32>, vector<32x128xf32>, vector<8x128xf32> -> vector<8x128xf32>
    %205 = arith.addf %203, %204 : vector<8x128xf32>
    %206 = vector.extract_strided_slice %205 {offsets = [0, 0], sizes = [8, 96], strides = [1, 1]} : vector<8x128xf32> to vector<8x96xf32>
    %207 = arith.negf %206 : vector<8x96xf32>
    %208 = math.exp %207 : vector<8x96xf32>
    %cst_52 = arith.constant 1.000000e+00 : f32
    %209 = vector.broadcast %cst_52 : f32 to vector<8x96xf32>
    %210 = arith.addf %209, %208 : vector<8x96xf32>
    %211 = arith.divf %209, %210 : vector<8x96xf32>
    %212 = vector.extract_strided_slice %211 {offsets = [0, 0], sizes = [8, 32], strides = [1, 1]} : vector<8x96xf32> to vector<8x32xf32>
    %213 = vector.extract_strided_slice %211 {offsets = [0, 32], sizes = [8, 32], strides = [1, 1]} : vector<8x96xf32> to vector<8x32xf32>
    %214 = vector.extract_strided_slice %211 {offsets = [0, 64], sizes = [8, 32], strides = [1, 1]} : vector<8x96xf32> to vector<8x32xf32>
    %215 = vector.extract_strided_slice %205 {offsets = [0, 96], sizes = [8, 32], strides = [1, 1]} : vector<8x128xf32> to vector<8x32xf32>
    %216 = math.tanh %215 : vector<8x32xf32>
    %217 = arith.mulf %213, %200 : vector<8x32xf32>
    %218 = arith.mulf %212, %216 : vector<8x32xf32>
    %219 = arith.addf %217, %218 : vector<8x32xf32>
    %220 = math.tanh %219 : vector<8x32xf32>
    %221 = arith.mulf %214, %220 : vector<8x32xf32>
    %222 = vector.extract_strided_slice %179 {offsets = [16, 0], sizes = [8, 128], strides = [1, 1]} : vector<64x128xf32> to vector<8x128xf32>
    %cst_53 = arith.constant dense<0.000000e+00> : vector<8x128xf32>
    %223 = tpu.matmul %221, %175, %cst_53 {dimension_numbers = #tpu.dot_dimension_numbers<[1], [0], [0], [1], [0, 0, 1, 1], [], []>} : vector<8x32xf32>, vector<32x128xf32>, vector<8x128xf32> -> vector<8x128xf32>
    %224 = arith.addf %222, %223 : vector<8x128xf32>
    %225 = vector.extract_strided_slice %224 {offsets = [0, 0], sizes = [8, 96], strides = [1, 1]} : vector<8x128xf32> to vector<8x96xf32>
    %226 = arith.negf %225 : vector<8x96xf32>
    %227 = math.exp %226 : vector<8x96xf32>
    %cst_54 = arith.constant 1.000000e+00 : f32
    %228 = vector.broadcast %cst_54 : f32 to vector<8x96xf32>
    %229 = arith.addf %228, %227 : vector<8x96xf32>
    %230 = arith.divf %228, %229 : vector<8x96xf32>
    %231 = vector.extract_strided_slice %230 {offsets = [0, 0], sizes = [8, 32], strides = [1, 1]} : vector<8x96xf32> to vector<8x32xf32>
    %232 = vector.extract_strided_slice %230 {offsets = [0, 32], sizes = [8, 32], strides = [1, 1]} : vector<8x96xf32> to vector<8x32xf32>
    %233 = vector.extract_strided_slice %230 {offsets = [0, 64], sizes = [8, 32], strides = [1, 1]} : vector<8x96xf32> to vector<8x32xf32>
    %234 = vector.extract_strided_slice %224 {offsets = [0, 96], sizes = [8, 32], strides = [1, 1]} : vector<8x128xf32> to vector<8x32xf32>
    %235 = math.tanh %234 : vector<8x32xf32>
    %236 = arith.mulf %232, %219 : vector<8x32xf32>
    %237 = arith.mulf %231, %235 : vector<8x32xf32>
    %238 = arith.addf %236, %237 : vector<8x32xf32>
    %239 = math.tanh %238 : vector<8x32xf32>
    %240 = arith.mulf %233, %239 : vector<8x32xf32>
    %241 = vector.extract_strided_slice %179 {offsets = [24, 0], sizes = [8, 128], strides = [1, 1]} : vector<64x128xf32> to vector<8x128xf32>
    %cst_55 = arith.constant dense<0.000000e+00> : vector<8x128xf32>
    %242 = tpu.matmul %240, %175, %cst_55 {dimension_numbers = #tpu.dot_dimension_numbers<[1], [0], [0], [1], [0, 0, 1, 1], [], []>} : vector<8x32xf32>, vector<32x128xf32>, vector<8x128xf32> -> vector<8x128xf32>
    %243 = arith.addf %241, %242 : vector<8x128xf32>
    %244 = vector.extract_strided_slice %243 {offsets = [0, 0], sizes = [8, 96], strides = [1, 1]} : vector<8x128xf32> to vector<8x96xf32>
    %245 = arith.negf %244 : vector<8x96xf32>
    %246 = math.exp %245 : vector<8x96xf32>
    %cst_56 = arith.constant 1.000000e+00 : f32
    %247 = vector.broadcast %cst_56 : f32 to vector<8x96xf32>
    %248 = arith.addf %247, %246 : vector<8x96xf32>
    %249 = arith.divf %247, %248 : vector<8x96xf32>
    %250 = vector.extract_strided_slice %249 {offsets = [0, 0], sizes = [8, 32], strides = [1, 1]} : vector<8x96xf32> to vector<8x32xf32>
    %251 = vector.extract_strided_slice %249 {offsets = [0, 32], sizes = [8, 32], strides = [1, 1]} : vector<8x96xf32> to vector<8x32xf32>
    %252 = vector.extract_strided_slice %249 {offsets = [0, 64], sizes = [8, 32], strides = [1, 1]} : vector<8x96xf32> to vector<8x32xf32>
    %253 = vector.extract_strided_slice %243 {offsets = [0, 96], sizes = [8, 32], strides = [1, 1]} : vector<8x128xf32> to vector<8x32xf32>
    %254 = math.tanh %253 : vector<8x32xf32>
    %255 = arith.mulf %251, %238 : vector<8x32xf32>
    %256 = arith.mulf %250, %254 : vector<8x32xf32>
    %257 = arith.addf %255, %256 : vector<8x32xf32>
    %258 = math.tanh %257 : vector<8x32xf32>
    %259 = arith.mulf %252, %258 : vector<8x32xf32>
    %260 = vector.extract_strided_slice %179 {offsets = [32, 0], sizes = [8, 128], strides = [1, 1]} : vector<64x128xf32> to vector<8x128xf32>
    %cst_57 = arith.constant dense<0.000000e+00> : vector<8x128xf32>
    %261 = tpu.matmul %259, %175, %cst_57 {dimension_numbers = #tpu.dot_dimension_numbers<[1], [0], [0], [1], [0, 0, 1, 1], [], []>} : vector<8x32xf32>, vector<32x128xf32>, vector<8x128xf32> -> vector<8x128xf32>
    %262 = arith.addf %260, %261 : vector<8x128xf32>
    %263 = vector.extract_strided_slice %262 {offsets = [0, 0], sizes = [8, 96], strides = [1, 1]} : vector<8x128xf32> to vector<8x96xf32>
    %264 = arith.negf %263 : vector<8x96xf32>
    %265 = math.exp %264 : vector<8x96xf32>
    %cst_58 = arith.constant 1.000000e+00 : f32
    %266 = vector.broadcast %cst_58 : f32 to vector<8x96xf32>
    %267 = arith.addf %266, %265 : vector<8x96xf32>
    %268 = arith.divf %266, %267 : vector<8x96xf32>
    %269 = vector.extract_strided_slice %268 {offsets = [0, 0], sizes = [8, 32], strides = [1, 1]} : vector<8x96xf32> to vector<8x32xf32>
    %270 = vector.extract_strided_slice %268 {offsets = [0, 32], sizes = [8, 32], strides = [1, 1]} : vector<8x96xf32> to vector<8x32xf32>
    %271 = vector.extract_strided_slice %268 {offsets = [0, 64], sizes = [8, 32], strides = [1, 1]} : vector<8x96xf32> to vector<8x32xf32>
    %272 = vector.extract_strided_slice %262 {offsets = [0, 96], sizes = [8, 32], strides = [1, 1]} : vector<8x128xf32> to vector<8x32xf32>
    %273 = math.tanh %272 : vector<8x32xf32>
    %274 = arith.mulf %270, %257 : vector<8x32xf32>
    %275 = arith.mulf %269, %273 : vector<8x32xf32>
    %276 = arith.addf %274, %275 : vector<8x32xf32>
    %277 = math.tanh %276 : vector<8x32xf32>
    %278 = arith.mulf %271, %277 : vector<8x32xf32>
    %279 = vector.extract_strided_slice %179 {offsets = [40, 0], sizes = [8, 128], strides = [1, 1]} : vector<64x128xf32> to vector<8x128xf32>
    %cst_59 = arith.constant dense<0.000000e+00> : vector<8x128xf32>
    %280 = tpu.matmul %278, %175, %cst_59 {dimension_numbers = #tpu.dot_dimension_numbers<[1], [0], [0], [1], [0, 0, 1, 1], [], []>} : vector<8x32xf32>, vector<32x128xf32>, vector<8x128xf32> -> vector<8x128xf32>
    %281 = arith.addf %279, %280 : vector<8x128xf32>
    %282 = vector.extract_strided_slice %281 {offsets = [0, 0], sizes = [8, 96], strides = [1, 1]} : vector<8x128xf32> to vector<8x96xf32>
    %283 = arith.negf %282 : vector<8x96xf32>
    %284 = math.exp %283 : vector<8x96xf32>
    %cst_60 = arith.constant 1.000000e+00 : f32
    %285 = vector.broadcast %cst_60 : f32 to vector<8x96xf32>
    %286 = arith.addf %285, %284 : vector<8x96xf32>
    %287 = arith.divf %285, %286 : vector<8x96xf32>
    %288 = vector.extract_strided_slice %287 {offsets = [0, 0], sizes = [8, 32], strides = [1, 1]} : vector<8x96xf32> to vector<8x32xf32>
    %289 = vector.extract_strided_slice %287 {offsets = [0, 32], sizes = [8, 32], strides = [1, 1]} : vector<8x96xf32> to vector<8x32xf32>
    %290 = vector.extract_strided_slice %287 {offsets = [0, 64], sizes = [8, 32], strides = [1, 1]} : vector<8x96xf32> to vector<8x32xf32>
    %291 = vector.extract_strided_slice %281 {offsets = [0, 96], sizes = [8, 32], strides = [1, 1]} : vector<8x128xf32> to vector<8x32xf32>
    %292 = math.tanh %291 : vector<8x32xf32>
    %293 = arith.mulf %289, %276 : vector<8x32xf32>
    %294 = arith.mulf %288, %292 : vector<8x32xf32>
    %295 = arith.addf %293, %294 : vector<8x32xf32>
    %296 = math.tanh %295 : vector<8x32xf32>
    %297 = arith.mulf %290, %296 : vector<8x32xf32>
    %298 = vector.extract_strided_slice %179 {offsets = [48, 0], sizes = [8, 128], strides = [1, 1]} : vector<64x128xf32> to vector<8x128xf32>
    %cst_61 = arith.constant dense<0.000000e+00> : vector<8x128xf32>
    %299 = tpu.matmul %297, %175, %cst_61 {dimension_numbers = #tpu.dot_dimension_numbers<[1], [0], [0], [1], [0, 0, 1, 1], [], []>} : vector<8x32xf32>, vector<32x128xf32>, vector<8x128xf32> -> vector<8x128xf32>
    %300 = arith.addf %298, %299 : vector<8x128xf32>
    %301 = vector.extract_strided_slice %300 {offsets = [0, 0], sizes = [8, 96], strides = [1, 1]} : vector<8x128xf32> to vector<8x96xf32>
    %302 = arith.negf %301 : vector<8x96xf32>
    %303 = math.exp %302 : vector<8x96xf32>
    %cst_62 = arith.constant 1.000000e+00 : f32
    %304 = vector.broadcast %cst_62 : f32 to vector<8x96xf32>
    %305 = arith.addf %304, %303 : vector<8x96xf32>
    %306 = arith.divf %304, %305 : vector<8x96xf32>
    %307 = vector.extract_strided_slice %306 {offsets = [0, 0], sizes = [8, 32], strides = [1, 1]} : vector<8x96xf32> to vector<8x32xf32>
    %308 = vector.extract_strided_slice %306 {offsets = [0, 32], sizes = [8, 32], strides = [1, 1]} : vector<8x96xf32> to vector<8x32xf32>
    %309 = vector.extract_strided_slice %306 {offsets = [0, 64], sizes = [8, 32], strides = [1, 1]} : vector<8x96xf32> to vector<8x32xf32>
    %310 = vector.extract_strided_slice %300 {offsets = [0, 96], sizes = [8, 32], strides = [1, 1]} : vector<8x128xf32> to vector<8x32xf32>
    %311 = math.tanh %310 : vector<8x32xf32>
    %312 = arith.mulf %308, %295 : vector<8x32xf32>
    %313 = arith.mulf %307, %311 : vector<8x32xf32>
    %314 = arith.addf %312, %313 : vector<8x32xf32>
    %315 = math.tanh %314 : vector<8x32xf32>
    %316 = arith.mulf %309, %315 : vector<8x32xf32>
    %317 = vector.extract_strided_slice %179 {offsets = [56, 0], sizes = [8, 128], strides = [1, 1]} : vector<64x128xf32> to vector<8x128xf32>
    %cst_63 = arith.constant dense<0.000000e+00> : vector<8x128xf32>
    %318 = tpu.matmul %316, %175, %cst_63 {dimension_numbers = #tpu.dot_dimension_numbers<[1], [0], [0], [1], [0, 0, 1, 1], [], []>} : vector<8x32xf32>, vector<32x128xf32>, vector<8x128xf32> -> vector<8x128xf32>
    %319 = arith.addf %317, %318 : vector<8x128xf32>
    %320 = vector.extract_strided_slice %319 {offsets = [0, 0], sizes = [8, 96], strides = [1, 1]} : vector<8x128xf32> to vector<8x96xf32>
    %321 = arith.negf %320 : vector<8x96xf32>
    %322 = math.exp %321 : vector<8x96xf32>
    %cst_64 = arith.constant 1.000000e+00 : f32
    %323 = vector.broadcast %cst_64 : f32 to vector<8x96xf32>
    %324 = arith.addf %323, %322 : vector<8x96xf32>
    %325 = arith.divf %323, %324 : vector<8x96xf32>
    %326 = vector.extract_strided_slice %325 {offsets = [0, 0], sizes = [8, 32], strides = [1, 1]} : vector<8x96xf32> to vector<8x32xf32>
    %327 = vector.extract_strided_slice %325 {offsets = [0, 32], sizes = [8, 32], strides = [1, 1]} : vector<8x96xf32> to vector<8x32xf32>
    %328 = vector.extract_strided_slice %325 {offsets = [0, 64], sizes = [8, 32], strides = [1, 1]} : vector<8x96xf32> to vector<8x32xf32>
    %329 = vector.extract_strided_slice %319 {offsets = [0, 96], sizes = [8, 32], strides = [1, 1]} : vector<8x128xf32> to vector<8x32xf32>
    %330 = math.tanh %329 : vector<8x32xf32>
    %331 = arith.mulf %327, %314 : vector<8x32xf32>
    %332 = arith.mulf %326, %330 : vector<8x32xf32>
    %333 = arith.addf %331, %332 : vector<8x32xf32>
    %334 = math.tanh %333 : vector<8x32xf32>
    %335 = arith.mulf %328, %334 : vector<8x32xf32>
    %c1_65 = arith.constant 1 : index
    %c0_66 = arith.constant 0 : index
    %c0_67 = arith.constant 0 : index
    %336 = vector.load %arg10[%c1_65, %c0_66, %c0_67] : memref<2x8x32xf32, #tpu.memory_space<vmem>>, vector<1x8x32xf32>
    %337 = vector.shape_cast %336 : vector<1x8x32xf32> to vector<8x32xf32>
    %338 = vector.shape_cast %335 : vector<8x32xf32> to vector<1x8x32xf32>
    tpu.vector_store %arg10[%c1_65, %c0_66, %c0_67], %338 {strides = array<i32>} : memref<2x8x32xf32, #tpu.memory_space<vmem>>, vector<1x8x32xf32>,
    %c1_68 = arith.constant 1 : index
    %c0_69 = arith.constant 0 : index
    %c0_70 = arith.constant 0 : index
    %339 = vector.load %arg11[%c1_68, %c0_69, %c0_70] : memref<2x8x32xf32, #tpu.memory_space<vmem>>, vector<1x8x32xf32>
    %340 = vector.shape_cast %339 : vector<1x8x32xf32> to vector<8x32xf32>
    %341 = vector.shape_cast %333 : vector<8x32xf32> to vector<1x8x32xf32>
    tpu.vector_store %arg11[%c1_68, %c0_69, %c0_70], %341 {strides = array<i32>} : memref<2x8x32xf32, #tpu.memory_space<vmem>>, vector<1x8x32xf32>,
    %c0_i32_71 = arith.constant 0 : i32
    %342 = arith.cmpi eq, %arg1, %c0_i32_71 : i32
    %343 = arith.extui %342 : i1 to i32
    %c0_i32_72 = arith.constant 0 : i32
    %344 = arith.cmpi ne, %343, %c0_i32_72 : i32
    scf.if %344 {
      %c1_73 = arith.constant 1 : index
      %c0_74 = arith.constant 0 : index
      %c0_75 = arith.constant 0 : index
      %345 = vector.load %arg10[%c1_73, %c0_74, %c0_75] : memref<2x8x32xf32, #tpu.memory_space<vmem>>, vector<1x8x32xf32>
      %346 = vector.shape_cast %345 : vector<1x8x32xf32> to vector<8x32xf32>
      %c0_76 = arith.constant 0 : index
      %c0_77 = arith.constant 0 : index
      %347 = vector.load %arg9[%c0_76, %c0_77] : memref<8x32xf32, #tpu.memory_space<vmem>>, vector<8x32xf32>
      tpu.vector_store %arg9[%c0_76, %c0_77], %346 {strides = array<i32>} : memref<8x32xf32, #tpu.memory_space<vmem>>, vector<8x32xf32>,
    } else {
    }
    return
  }
  func.func @transform_0(%arg0: i32, %arg1: i32) -> (i32, i32, i32) {
    %c0_i32 = arith.constant 0 : i32
    %c0_i32_0 = arith.constant 0 : i32
    return %arg1, %arg0, %c0_i32 : i32, i32, i32
  }
  func.func @transform_1(%arg0: i32, %arg1: i32) -> (i32, i32) {
    %c0_i32 = arith.constant 0 : i32
    %c0_i32_0 = arith.constant 0 : i32
    %c0_i32_1 = arith.constant 0 : i32
    return %c0_i32, %c0_i32_0 : i32, i32
  }
  func.func @transform_2(%arg0: i32, %arg1: i32) -> (i32, i32) {
    %c0_i32 = arith.constant 0 : i32
    %c0_i32_0 = arith.constant 0 : i32
    %c0_i32_1 = arith.constant 0 : i32
    return %c0_i32, %c0_i32_0 : i32, i32
  }
  func.func @transform_3(%arg0: i32, %arg1: i32) -> (i32, i32) {
    %c0_i32 = arith.constant 0 : i32
    %c0_i32_0 = arith.constant 0 : i32
    %c0_i32_1 = arith.constant 0 : i32
    return %c0_i32, %c0_i32_0 : i32, i32
  }
  func.func @transform_4(%arg0: i32, %arg1: i32) -> (i32, i32) {
    %c0_i32 = arith.constant 0 : i32
    %c0_i32_0 = arith.constant 0 : i32
    %c0_i32_1 = arith.constant 0 : i32
    return %c0_i32, %c0_i32_0 : i32, i32
  }
  func.func @transform_5(%arg0: i32, %arg1: i32) -> (i32, i32) {
    %c0_i32 = arith.constant 0 : i32
    %c0_i32_0 = arith.constant 0 : i32
    %c0_i32_1 = arith.constant 0 : i32
    return %c0_i32, %c0_i32_0 : i32, i32
  }
  func.func @transform_6(%arg0: i32, %arg1: i32) -> (i32, i32) {
    %c0_i32 = arith.constant 0 : i32
    %c0_i32_0 = arith.constant 0 : i32
    %c0_i32_1 = arith.constant 0 : i32
    return %c0_i32, %c0_i32_0 : i32, i32
  }
  func.func @transform_7(%arg0: i32, %arg1: i32) -> (i32, i32) {
    %c0_i32 = arith.constant 0 : i32
    %c0_i32_0 = arith.constant 0 : i32
    return %arg0, %c0_i32 : i32, i32
  }
}

</mosaic_0001>

<llo_original>
// kernel: tpu_custom_call.1
$region0: #{tpu_custom_call.1}
  #allocation0 [shape = 'u32[]', space=smem, size = 0x4, offset = 0x4, fixed_abs, tag = 'smem constant byte address 0x4 - core index']
  #allocation1 [shape = 'u32[144,128]{1,0:T(1,128)}', space=vmem, size = 0x12000, scoped, tag = 'internal scratch']
  #allocation2 [shape = 'f32[2,8,32]{2,1,0:T(8,128)}', space=vmem, size = 0x2000, scoped, tag = 'scratch operand']
  #allocation3 [shape = 'f32[2,8,32]{2,1,0:T(8,128)}', space=vmem, size = 0x2000, scoped, tag = 'scratch operand']
  %s0 = inlined_call_operand.hbm [shape: f32[8,8,16], index: 0, kind: input, shape index: {}]
  %s1 = inlined_call_operand.hbm [shape: f32[16,128], index: 1, kind: input, shape index: {}]
  %s2 = inlined_call_operand.hbm [shape: f32[32,128], index: 2, kind: input, shape index: {}]
  %s3 = inlined_call_operand.vmem [shape: f32[1,128], index: 3, kind: input, shape index: {}]
  %s4 = inlined_call_operand.hbm [shape: f32[32,128], index: 4, kind: input, shape index: {}]
  %s5 = inlined_call_operand.hbm [shape: f32[32,128], index: 5, kind: input, shape index: {}]
  %s6 = inlined_call_operand.vmem [shape: f32[1,128], index: 6, kind: input, shape index: {}]
  %s7 = inlined_call_operand.hbm [shape: f32[8,32], index: 7, kind: output, shape index: {}]
  %s8 = sld [smem:[#allocation0]]
  $region66: #{tpu_custom_call.1} parent=0
    _
  %s10 = ssub.s32 1, %s8
  %s11 = scalar_select 0, %s10, %s8
  $region1: #{tpu_custom_call.1} parent=0
    #allocation4 [shape = 'u8[32768]{0}', space=vmem, size = 0x8000, scoped, tag = 'input window, operand 0, single buffered']
    #allocation5 [shape = 's32[1]{0}', space=sflag, size = 0x4, scoped, tag = 'scoped memory for tpu_custom_call.1']
    #allocation6 [shape = 's32[1]{0}', space=sflag, size = 0x4, scoped, tag = 'scoped memory for tpu_custom_call.1']
    #allocation7 [shape = 'u8[8192]{0}', space=vmem, size = 0x2000, scoped, tag = 'input window, operand 1, single buffered']
    #allocation8 [shape = 's32[1]{0}', space=sflag, size = 0x4, scoped, tag = 'scoped memory for tpu_custom_call.1']
    #allocation9 [shape = 'u8[16384]{0}', space=vmem, size = 0x4000, scoped, tag = 'input window, operand 2, single buffered']
    #allocation10 [shape = 'u8[16384]{0}', space=vmem, size = 0x4000, scoped, tag = 'input window, operand 4, single buffered']
    #allocation11 [shape = 's32[1]{0}', space=sflag, size = 0x4, scoped, tag = 'scoped memory for tpu_custom_call.1']
    #allocation12 [shape = 'u8[16384]{0}', space=vmem, size = 0x4000, scoped, tag = 'input window, operand 5, single buffered']
    #allocation13 [shape = 'u8[4096]{0}', space=vmem, size = 0x1000, scoped, tag = 'output window, operand 0, single buffered']
    %12 = vsyncpa [#allocation5], 0
    %13 = vsyncpa [#allocation8], 0
    %14 = vsyncpa [#allocation11], 0
    %15 = vsyncpa [#allocation6], 0
    // Predicated region
    $region2: #{tpu_custom_call.1} parent=1 // pred_check
      _
    $region3: #{tpu_custom_call.1} parent=1 // pred_check_branch
      %17 = sbr.rel (0) target = $region5
    $region4: #{tpu_custom_call.1} parent=1 // pred_region
      %s19 = ssub.s32 1024, 1024
      %20 = vsyncadd [#allocation5], %s19
      %s21 = sshll.u32 [#allocation4], 4
      %s22 = int_to_ptr.vmem [resolvable:$true] %s21
      %27 = dma.hbm_to_vmem [thread:$0]  %s0, 1024, %s22, [#allocation5], 128, 128, 8
    $region5: #{tpu_custom_call.1} parent=1 // pred_fallthru
      _
    // Predicated region
    $region6: #{tpu_custom_call.1} parent=1 // pred_check
      _
    $region7: #{tpu_custom_call.1} parent=1 // pred_check_branch
      %29 = sbr.rel (0) target = $region9
    $region8: #{tpu_custom_call.1} parent=1 // pred_region
      %s31 = ssub.s32 256, 256
      %32 = vsyncadd [#allocation8], %s31
      %s33 = sshll.u32 [#allocation7], 4
      %s34 = int_to_ptr.vmem [resolvable:$true] %s33
      %39 = dma.hbm_to_vmem [thread:$0]  %s1, 256, %s34, [#allocation8], 128, 128, 8
    $region9: #{tpu_custom_call.1} parent=1 // pred_fallthru
      _
    // Predicated region
    $region10: #{tpu_custom_call.1} parent=1 // pred_check
      _
    $region11: #{tpu_custom_call.1} parent=1 // pred_check_branch
      %41 = sbr.rel (0) target = $region13
    $region12: #{tpu_custom_call.1} parent=1 // pred_region
      %s43 = ssub.s32 512, 512
      %44 = vsyncadd [#allocation8], %s43
      %s45 = sshll.u32 [#allocation9], 4
      %s46 = int_to_ptr.vmem [resolvable:$true] %s45
      %51 = dma.hbm_to_vmem [thread:$0]  %s2, 512, %s46, [#allocation8], 128, 128, 8
    $region13: #{tpu_custom_call.1} parent=1 // pred_fallthru
      _
    // Predicated region
    $region14: #{tpu_custom_call.1} parent=1 // pred_check
      _
    $region15: #{tpu_custom_call.1} parent=1 // pred_check_branch
      %53 = sbr.rel (0) target = $region17
    $region16: #{tpu_custom_call.1} parent=1 // pred_region
      _
    $region17: #{tpu_custom_call.1} parent=1 // pred_fallthru
      _
    // Predicated region
    $region18: #{tpu_custom_call.1} parent=1 // pred_check
      _
    $region19: #{tpu_custom_call.1} parent=1 // pred_check_branch
      %55 = sbr.rel (0) target = $region21
    $region20: #{tpu_custom_call.1} parent=1 // pred_region
      %s57 = ssub.s32 512, 512
      %58 = vsyncadd [#allocation11], %s57
      %s59 = sshll.u32 [#allocation10], 4
      %s60 = int_to_ptr.vmem [resolvable:$true] %s59
      %65 = dma.hbm_to_vmem [thread:$0]  %s4, 512, %s60, [#allocation11], 128, 128, 8
    $region21: #{tpu_custom_call.1} parent=1 // pred_fallthru
      _
    // Predicated region
    $region22: #{tpu_custom_call.1} parent=1 // pred_check
      _
    $region23: #{tpu_custom_call.1} parent=1 // pred_check_branch
      %67 = sbr.rel (0) target = $region25
    $region24: #{tpu_custom_call.1} parent=1 // pred_region
      %s69 = ssub.s32 512, 512
      %70 = vsyncadd [#allocation11], %s69
      %s71 = sshll.u32 [#allocation12], 4
      %s72 = int_to_ptr.vmem [resolvable:$true] %s71
      %77 = dma.hbm_to_vmem [thread:$0]  %s5, 512, %s72, [#allocation11], 128, 128, 8
    $region25: #{tpu_custom_call.1} parent=1 // pred_fallthru
      _
    // Predicated region
    $region26: #{tpu_custom_call.1} parent=1 // pred_check
      _
    $region27: #{tpu_custom_call.1} parent=1 // pred_check_branch
      %79 = sbr.rel (0) target = $region29
    $region28: #{tpu_custom_call.1} parent=1 // pred_region
      _
    $region29: #{tpu_custom_call.1} parent=1 // pred_fallthru
      _
    // Predicated region
    $region30: #{tpu_custom_call.1} parent=1 // pred_check
      _
    $region31: #{tpu_custom_call.1} parent=1 // pred_check_branch
      %81 = sbr.rel (0) target = $region33
    $region32: #{tpu_custom_call.1} parent=1 // pred_region
      %82 = dma.done [#allocation5], 1024
    $region33: #{tpu_custom_call.1} parent=1 // pred_fallthru
      _
    // Predicated region
    $region34: #{tpu_custom_call.1} parent=1 // pred_check
      _
    $region35: #{tpu_custom_call.1} parent=1 // pred_check_branch
      %84 = sbr.rel (0) target = $region37
    $region36: #{tpu_custom_call.1} parent=1 // pred_region
      %85 = dma.done [#allocation8], 256
    $region37: #{tpu_custom_call.1} parent=1 // pred_fallthru
      _
    // Predicated region
    $region38: #{tpu_custom_call.1} parent=1 // pred_check
      _
    $region39: #{tpu_custom_call.1} parent=1 // pred_check_branch
      %87 = sbr.rel (0) target = $region41
    $region40: #{tpu_custom_call.1} parent=1 // pred_region
      %88 = dma.done [#allocation8], 512
    $region41: #{tpu_custom_call.1} parent=1 // pred_fallthru
      _
    // Predicated region
    $region42: #{tpu_custom_call.1} parent=1 // pred_check
      _
    $region43: #{tpu_custom_call.1} parent=1 // pred_check_branch
      %90 = sbr.rel (0) target = $region45
    $region44: #{tpu_custom_call.1} parent=1 // pred_region
      %91 = dma.done [#allocation11], 512
    $region45: #{tpu_custom_call.1} parent=1 // pred_fallthru
      _
    // Predicated region
    $region46: #{tpu_custom_call.1} parent=1 // pred_check
      _
    $region47: #{tpu_custom_call.1} parent=1 // pred_check_branch
      %93 = sbr.rel (0) target = $region49
    $region48: #{tpu_custom_call.1} parent=1 // pred_region
      %94 = dma.done [#allocation11], 512
    $region49: #{tpu_custom_call.1} parent=1 // pred_fallthru
      _
    %p95 = scmp.eq.s32.totalorder 0, 0
    // Predicated region
    $region50: #{tpu_custom_call.1} parent=1 // pred_check
      %p96 = pneg %p95
    $region51: #{tpu_custom_call.1} parent=1 // pred_check_branch
      %98 = sbr.rel (%p96) target = $region53
    $region52: #{tpu_custom_call.1} parent=1 // pred_region
      %vm99 = vcmask 261120
      %100 = vst.msk [vmem:[#allocation2] sm:$0xff] %vm99, 0.0
      %101 = vst.msk [vmem:[#allocation2 + $0x8] sm:$0xff] %vm99, 0.0
      %102 = vst.msk [vmem:[#allocation3] sm:$0xff] %vm99, 0.0
      %103 = vst.msk [vmem:[#allocation3 + $0x8] sm:$0xff] %vm99, 0.0
    $region53: #{tpu_custom_call.1} parent=1 // pred_fallthru
      _
    %v104 = vld [vmem:[#allocation4] sm:$0xff]
    %v105 = vld [vmem:[#allocation4 + $0x8] sm:$0xff]
    %v106 = vld [vmem:[#allocation4 + $0x10] sm:$0xff]
    %v107 = vld [vmem:[#allocation4 + $0x18] sm:$0xff]
    %v108 = vld [vmem:[#allocation4 + $0x20] sm:$0xff]
    %v109 = vld [vmem:[#allocation4 + $0x28] sm:$0xff]
    %v110 = vld [vmem:[#allocation4 + $0x30] sm:$0xff]
    %v111 = vld [vmem:[#allocation4 + $0x38] sm:$0xff]
    %v112 = vld [vmem:[#allocation7] sm:$0xff]
    %v113 = vld [vmem:[#allocation7 + $0x8] sm:$0xff]
    %v114 = vld [vmem:[#allocation9] sm:$0xff]
    %v115 = vld [vmem:[#allocation9 + $0x8] sm:$0xff]
    %v116 = vld [vmem:[#allocation9 + $0x10] sm:$0xff]
    %v117 = vld [vmem:[#allocation9 + $0x18] sm:$0xff]
    %v118 = vld [vmem:[%s3] sm:$0x1]
    %v120 = vlaneseq
    %v121 = vshrl.u32 %v120, 7
    %v122 = vsub.s32 0, %v121
    %v123 = vrot.slane %v118, %v122
    %vm125 = vcmask 130048
    %v127 = vsel %vm125, %v104, 0
    %v130 = vsel %vm125, %v105, 0
    %v133 = vsel %vm125, %v106, 0
    %v136 = vsel %vm125, %v107, 0
    %v139 = vsel %vm125, %v108, 0
    %v142 = vsel %vm125, %v109, 0
    %v145 = vsel %vm125, %v110, 0
    %v148 = vsel %vm125, %v111, 0
    %150 = vmatprep.subr.mxu0 0.0
    %151 = vmatpush1.msra.mxu0 %v112
    %152 = vmatprep.subr.mxu0 0.0
    %153 = vmatpush1.msra.mxu0 %v113
    %154 = vmatprep.subr.mxu0 0.0
    %155 = vmatpush1.msra.mxu0 0.0
    %156 = vmatprep.subr.mxu0 0.0
    %157 = vmatpush1.msra.mxu0 0.0
    %158 = vmatprep.subr.mxu0 0.0
    %159 = vmatpush1.msra.mxu0 0.0
    %160 = vmatprep.subr.mxu0 0.0
    %161 = vmatpush1.msra.mxu0 0.0
    %162 = vmatprep.subr.mxu0 0.0
    %163 = vmatpush1.msra.mxu0 0.0
    %164 = vmatprep.subr.mxu0 0.0
    %165 = vmatpush1.msra.mxu0 0.0
    %166 = vmatprep.subr.mxu0 0.0
    %167 = vmatpush1.msra.mxu0 0.0
    %168 = vmatprep.subr.mxu0 0.0
    %169 = vmatpush1.msra.mxu0 0.0
    %170 = vmatprep.subr.mxu0 0.0
    %171 = vmatpush1.msra.mxu0 0.0
    %172 = vmatprep.subr.mxu0 0.0
    %173 = vmatpush1.msra.mxu0 0.0
    %174 = vmatprep.subr.mxu0 0.0
    %175 = vmatpush1.msra.mxu0 0.0
    %176 = vmatprep.subr.mxu0 0.0
    %177 = vmatpush1.msra.mxu0 0.0
    %178 = vmatprep.subr.mxu0 0.0
    %179 = vmatpush1.msra.mxu0 0.0
    %180 = vmatprep.subr.mxu0 0.0
    %181 = vmatpush1.msra.mxu0 0.0
    %182 = vmatprep.subr.mxu0 0.0
    %183 = vmatpush1.msra.mxu0 0.0
    %184 = vmatprep.subr.mxu0 0.0
    %185 = vmatpush1.msra.mxu0 0.0
    %186 = vmatprep.subr.mxu0 0.0
    %187 = vmatpush1.msra.mxu0 0.0
    %188 = vmatprep.subr.mxu0 0.0
    %189 = vmatpush1.msra.mxu0 0.0
    %190 = vmatprep.subr.mxu0 0.0
    %191 = vmatpush1.msra.mxu0 0.0
    %192 = vmatprep.subr.mxu0 0.0
    %193 = vmatpush1.msra.mxu0 0.0
    %194 = vmatprep.subr.mxu0 0.0
    %195 = vmatpush1.msra.mxu0 0.0
    %196 = vmatprep.subr.mxu0 0.0
    %197 = vmatpush1.msra.mxu0 0.0
    %198 = vmatprep.subr.mxu0 0.0
    %199 = vmatpush1.msra.mxu0 0.0
    %200 = vmatprep.subr.mxu0 0.0
    %201 = vmatpush1.msra.mxu0 0.0
    %202 = vmatprep.subr.mxu0 0.0
    %203 = vmatpush1.msra.mxu0 0.0
    %204 = vmatprep.subr.mxu0 0.0
    %205 = vmatpush1.msra.mxu0 0.0
    %206 = vmatprep.subr.mxu0 0.0
    %207 = vmatpush1.msra.mxu0 0.0
    %208 = vmatprep.subr.mxu0 0.0
    %209 = vmatpush1.msra.mxu0 0.0
    %210 = vmatprep.subr.mxu0 0.0
    %211 = vmatpush1.msra.mxu0 0.0
    %212 = vmatprep.subr.mxu0 0.0
    %213 = vmatpush1.msra.mxu0 0.0
    %214 = vmatprep.mubr.f32.mxu0 0.0
    %215 = vmatmul.mubr.f32.gmra.mrb[0].mxu0 %v127
    %v216 = vpop.f32.mrb[0].mxu0
    %v217 = vadd.f32 %v123, %v216
    %v218 = vpop.f32.mrb[0].mxu0
    %219 = vmatprep.mubr.f32.mxu0 0.0
    %220 = vmatmul.mubr.f32.gmra.mrb[0].mxu0 %v130
    %v221 = vpop.f32.mrb[0].mxu0
    %v222 = vadd.f32 %v123, %v221
    %v223 = vpop.f32.mrb[0].mxu0
    %224 = vmatprep.mubr.f32.mxu0 0.0
    %225 = vmatmul.mubr.f32.gmra.mrb[0].mxu0 %v133
    %v226 = vpop.f32.mrb[0].mxu0
    %v227 = vadd.f32 %v123, %v226
    %v228 = vpop.f32.mrb[0].mxu0
    %229 = vmatprep.mubr.f32.mxu0 0.0
    %230 = vmatmul.mubr.f32.gmra.mrb[0].mxu0 %v136
    %v231 = vpop.f32.mrb[0].mxu0
    %v232 = vadd.f32 %v123, %v231
    %v233 = vpop.f32.mrb[0].mxu0
    %234 = vmatprep.mubr.f32.mxu0 0.0
    %235 = vmatmul.mubr.f32.gmra.mrb[0].mxu0 %v139
    %v236 = vpop.f32.mrb[0].mxu0
    %v237 = vadd.f32 %v123, %v236
    %v238 = vpop.f32.mrb[0].mxu0
    %239 = vmatprep.mubr.f32.mxu0 0.0
    %240 = vmatmul.mubr.f32.gmra.mrb[0].mxu0 %v142
    %v241 = vpop.f32.mrb[0].mxu0
    %v242 = vadd.f32 %v123, %v241
    %v243 = vpop.f32.mrb[0].mxu0
    %244 = vmatprep.mubr.f32.mxu0 0.0
    %245 = vmatmul.mubr.f32.gmra.mrb[0].mxu0 %v145
    %v246 = vpop.f32.mrb[0].mxu0
    %v247 = vadd.f32 %v123, %v246
    %v248 = vpop.f32.mrb[0].mxu0
    %249 = vmatprep.mubr.f32.mxu0 0.0
    %250 = vmatmul.mubr.f32.gmra.mrb[0].mxu0 %v148
    %v251 = vpop.f32.mrb[0].mxu0
    %v252 = vadd.f32 %v123, %v251
    %v253 = vpop.f32.mrb[0].mxu0
    %254 = vdwg.mxu0
    %v255 = vld [vmem:[#allocation2] sm:$0xff]
    %v256 = vld [vmem:[#allocation3] sm:$0xff]
    %vm257 = vcmask 261120
    %v259 = vsel %vm257, %v255, 0
    %261 = vmatprep.subr.mxu0 0.0
    %262 = vmatpush1.msra.mxu0 %v114
    %263 = vmatprep.subr.mxu0 0.0
    %264 = vmatpush1.msra.mxu0 %v115
    %265 = vmatprep.subr.mxu0 0.0
    %266 = vmatpush1.msra.mxu0 %v116
    %267 = vmatprep.subr.mxu0 0.0
    %268 = vmatpush1.msra.mxu0 %v117
    %269 = vmatprep.subr.mxu0 0.0
    %270 = vmatpush1.msra.mxu0 0.0
    %271 = vmatprep.subr.mxu0 0.0
    %272 = vmatpush1.msra.mxu0 0.0
    %273 = vmatprep.subr.mxu0 0.0
    %274 = vmatpush1.msra.mxu0 0.0
    %275 = vmatprep.subr.mxu0 0.0
    %276 = vmatpush1.msra.mxu0 0.0
    %277 = vmatprep.subr.mxu0 0.0
    %278 = vmatpush1.msra.mxu0 0.0
    %279 = vmatprep.subr.mxu0 0.0
    %280 = vmatpush1.msra.mxu0 0.0
    %281 = vmatprep.subr.mxu0 0.0
    %282 = vmatpush1.msra.mxu0 0.0
    %283 = vmatprep.subr.mxu0 0.0
    %284 = vmatpush1.msra.mxu0 0.0
    %285 = vmatprep.subr.mxu0 0.0
    %286 = vmatpush1.msra.mxu0 0.0
    %287 = vmatprep.subr.mxu0 0.0
    %288 = vmatpush1.msra.mxu0 0.0
    %289 = vmatprep.subr.mxu0 0.0
    %290 = vmatpush1.msra.mxu0 0.0
    %291 = vmatprep.subr.mxu0 0.0
    %292 = vmatpush1.msra.mxu0 0.0
    %293 = vmatprep.subr.mxu0 0.0
    %294 = vmatpush1.msra.mxu0 0.0
    %295 = vmatprep.subr.mxu0 0.0
    %296 = vmatpush1.msra.mxu0 0.0
    %297 = vmatprep.subr.mxu0 0.0
    %298 = vmatpush1.msra.mxu0 0.0
    %299 = vmatprep.subr.mxu0 0.0
    %300 = vmatpush1.msra.mxu0 0.0
    %301 = vmatprep.subr.mxu0 0.0
    %302 = vmatpush1.msra.mxu0 0.0
    %303 = vmatprep.subr.mxu0 0.0
    %304 = vmatpush1.msra.mxu0 0.0
    %305 = vmatprep.subr.mxu0 0.0
    %306 = vmatpush1.msra.mxu0 0.0
    %307 = vmatprep.subr.mxu0 0.0
    %308 = vmatpush1.msra.mxu0 0.0
    %309 = vmatprep.subr.mxu0 0.0
    %310 = vmatpush1.msra.mxu0 0.0
    %311 = vmatprep.subr.mxu0 0.0
    %312 = vmatpush1.msra.mxu0 0.0
    %313 = vmatprep.subr.mxu0 0.0
    %314 = vmatpush1.msra.mxu0 0.0
    %315 = vmatprep.subr.mxu0 0.0
    %316 = vmatpush1.msra.mxu0 0.0
    %317 = vmatprep.subr.mxu0 0.0
    %318 = vmatpush1.msra.mxu0 0.0
    %319 = vmatprep.subr.mxu0 0.0
    %320 = vmatpush1.msra.mxu0 0.0
    %321 = vmatprep.subr.mxu0 0.0
    %322 = vmatpush1.msra.mxu0 0.0
    %323 = vmatprep.subr.mxu0 0.0
    %324 = vmatpush1.msra.mxu0 0.0
    %325 = vmatprep.mubr.f32.mxu0 0.0
    %326 = vmatmul.mubr.f32.gmra.mrb[0].mxu0 %v259
    %v327 = vpop.f32.mrb[0].mxu0
    %v328 = vadd.f32 0.0, %v327
    %v329 = vpop.f32.mrb[0].mxu0
    %330 = vdwg.mxu0
    %v331 = vadd.f32 %v217, %v328
    %v332 = vxor.u32 %v331, 2147483648
    %v333 = vmul.f32 %v332, 1.442695
    %v334 = vpow.pop %v333
    %v335 = vadd.f32 %v334, 1.0
    %v336 = vrcp.pop %v335
    %v337 = vmul.f32 1.0, %v336
    %v338 = vtanh.pop %v331
    %340 = vrot.lane.b32.xlu0 %v256, 32
    %v341 = vpop.permute.xlu0 %340
    %v343 = vmul.f32 %v337, %v341
    %345 = vrot.lane.b32.xlu0 %v338, 32
    %v346 = vpop.permute.xlu0 %345
    %v348 = vmul.f32 %v337, %v346
    %350 = vrot.lane.b32.xlu0 %v348, 32
    %v351 = vpop.permute.xlu0 %350
    %v353 = vadd.f32 %v343, %v351
    %v354 = vtanh.pop %v353
    %356 = vrot.lane.b32.xlu0 %v354, 32
    %v357 = vpop.permute.xlu0 %356
    %v359 = vmul.f32 %v337, %v357
    %361 = vrot.lane.b32.xlu0 %v359, 64
    %v362 = vpop.permute.xlu0 %361
    %v363 = vsel %vm257, %v362, 0
    %365 = vmatprep.subr.mxu0 0.0
    %366 = vmatpush1.msra.mxu0 %v114
    %367 = vmatprep.subr.mxu0 0.0
    %368 = vmatpush1.msra.mxu0 %v115
    %369 = vmatprep.subr.mxu0 0.0
    %370 = vmatpush1.msra.mxu0 %v116
    %371 = vmatprep.subr.mxu0 0.0
    %372 = vmatpush1.msra.mxu0 %v117
    %373 = vmatprep.subr.mxu0 0.0
    %374 = vmatpush1.msra.mxu0 0.0
    %375 = vmatprep.subr.mxu0 0.0
    %376 = vmatpush1.msra.mxu0 0.0
    %377 = vmatprep.subr.mxu0 0.0
    %378 = vmatpush1.msra.mxu0 0.0
    %379 = vmatprep.subr.mxu0 0.0
    %380 = vmatpush1.msra.mxu0 0.0
    %381 = vmatprep.subr.mxu0 0.0
    %382 = vmatpush1.msra.mxu0 0.0
    %383 = vmatprep.subr.mxu0 0.0
    %384 = vmatpush1.msra.mxu0 0.0
    %385 = vmatprep.subr.mxu0 0.0
    %386 = vmatpush1.msra.mxu0 0.0
    %387 = vmatprep.subr.mxu0 0.0
    %388 = vmatpush1.msra.mxu0 0.0
    %389 = vmatprep.subr.mxu0 0.0
    %390 = vmatpush1.msra.mxu0 0.0
    %391 = vmatprep.subr.mxu0 0.0
    %392 = vmatpush1.msra.mxu0 0.0
    %393 = vmatprep.subr.mxu0 0.0
    %394 = vmatpush1.msra.mxu0 0.0
    %395 = vmatprep.subr.mxu0 0.0
    %396 = vmatpush1.msra.mxu0 0.0
    %397 = vmatprep.subr.mxu0 0.0
    %398 = vmatpush1.msra.mxu0 0.0
    %399 = vmatprep.subr.mxu0 0.0
    %400 = vmatpush1.msra.mxu0 0.0
    %401 = vmatprep.subr.mxu0 0.0
    %402 = vmatpush1.msra.mxu0 0.0
    %403 = vmatprep.subr.mxu0 0.0
    %404 = vmatpush1.msra.mxu0 0.0
    %405 = vmatprep.subr.mxu0 0.0
    %406 = vmatpush1.msra.mxu0 0.0
    %407 = vmatprep.subr.mxu0 0.0
    %408 = vmatpush1.msra.mxu0 0.0
    %409 = vmatprep.subr.mxu0 0.0
    %410 = vmatpush1.msra.mxu0 0.0
    %411 = vmatprep.subr.mxu0 0.0
    %412 = vmatpush1.msra.mxu0 0.0
    %413 = vmatprep.subr.mxu0 0.0
    %414 = vmatpush1.msra.mxu0 0.0
    %415 = vmatprep.subr.mxu0 0.0
    %416 = vmatpush1.msra.mxu0 0.0
    %417 = vmatprep.subr.mxu0 0.0
    %418 = vmatpush1.msra.mxu0 0.0
    %419 = vmatprep.subr.mxu0 0.0
    %420 = vmatpush1.msra.mxu0 0.0
    %421 = vmatprep.subr.mxu0 0.0
    %422 = vmatpush1.msra.mxu0 0.0
    %423 = vmatprep.subr.mxu0 0.0
    %424 = vmatpush1.msra.mxu0 0.0
    %425 = vmatprep.subr.mxu0 0.0
    %426 = vmatpush1.msra.mxu0 0.0
    %427 = vmatprep.subr.mxu0 0.0
    %428 = vmatpush1.msra.mxu0 0.0
    %429 = vmatprep.mubr.f32.mxu0 0.0
    %430 = vmatmul.mubr.f32.gmra.mrb[0].mxu0 %v363
    %v431 = vpop.f32.mrb[0].mxu0
    %v432 = vadd.f32 0.0, %v431
    %v433 = vpop.f32.mrb[0].mxu0
    %434 = vdwg.mxu0
    %v435 = vadd.f32 %v222, %v432
    %v436 = vxor.u32 %v435, 2147483648
    %v437 = vmul.f32 %v436, 1.442695
    %v438 = vpow.pop %v437
    %v439 = vadd.f32 %v438, 1.0
    %v440 = vrcp.pop %v439
    %v441 = vmul.f32 1.0, %v440
    %v442 = vtanh.pop %v435
    %v443 = vmul.f32 %v441, %v353
    %445 = vrot.lane.b32.xlu0 %v442, 32
    %v446 = vpop.permute.xlu0 %445
    %v448 = vmul.f32 %v441, %v446
    %450 = vrot.lane.b32.xlu0 %v448, 32
    %v451 = vpop.permute.xlu0 %450
    %v453 = vadd.f32 %v443, %v451
    %v454 = vtanh.pop %v453
    %456 = vrot.lane.b32.xlu0 %v454, 32
    %v457 = vpop.permute.xlu0 %456
    %v459 = vmul.f32 %v441, %v457
    %461 = vrot.lane.b32.xlu0 %v459, 64
    %v462 = vpop.permute.xlu0 %461
    %v463 = vsel %vm257, %v462, 0
    %465 = vmatprep.subr.mxu0 0.0
    %466 = vmatpush1.msra.mxu0 %v114
    %467 = vmatprep.subr.mxu0 0.0
    %468 = vmatpush1.msra.mxu0 %v115
    %469 = vmatprep.subr.mxu0 0.0
    %470 = vmatpush1.msra.mxu0 %v116
    %471 = vmatprep.subr.mxu0 0.0
    %472 = vmatpush1.msra.mxu0 %v117
    %473 = vmatprep.subr.mxu0 0.0
    %474 = vmatpush1.msra.mxu0 0.0
    %475 = vmatprep.subr.mxu0 0.0
    %476 = vmatpush1.msra.mxu0 0.0
    %477 = vmatprep.subr.mxu0 0.0
    %478 = vmatpush1.msra.mxu0 0.0
    %479 = vmatprep.subr.mxu0 0.0
    %480 = vmatpush1.msra.mxu0 0.0
    %481 = vmatprep.subr.mxu0 0.0
    %482 = vmatpush1.msra.mxu0 0.0
    %483 = vmatprep.subr.mxu0 0.0
    %484 = vmatpush1.msra.mxu0 0.0
    %485 = vmatprep.subr.mxu0 0.0
    %486 = vmatpush1.msra.mxu0 0.0
    %487 = vmatprep.subr.mxu0 0.0
    %488 = vmatpush1.msra.mxu0 0.0
    %489 = vmatprep.subr.mxu0 0.0
    %490 = vmatpush1.msra.mxu0 0.0
    %491 = vmatprep.subr.mxu0 0.0
    %492 = vmatpush1.msra.mxu0 0.0
    %493 = vmatprep.subr.mxu0 0.0
    %494 = vmatpush1.msra.mxu0 0.0
    %495 = vmatprep.subr.mxu0 0.0
    %496 = vmatpush1.msra.mxu0 0.0
    %497 = vmatprep.subr.mxu0 0.0
    %498 = vmatpush1.msra.mxu0 0.0
    %499 = vmatprep.subr.mxu0 0.0
    %500 = vmatpush1.msra.mxu0 0.0
    %501 = vmatprep.subr.mxu0 0.0
    %502 = vmatpush1.msra.mxu0 0.0
    %503 = vmatprep.subr.mxu0 0.0
    %504 = vmatpush1.msra.mxu0 0.0
    %505 = vmatprep.subr.mxu0 0.0
    %506 = vmatpush1.msra.mxu0 0.0
    %507 = vmatprep.subr.mxu0 0.0
    %508 = vmatpush1.msra.mxu0 0.0
    %509 = vmatprep.subr.mxu0 0.0
    %510 = vmatpush1.msra.mxu0 0.0
    %511 = vmatprep.subr.mxu0 0.0
    %512 = vmatpush1.msra.mxu0 0.0
    %513 = vmatprep.subr.mxu0 0.0
    %514 = vmatpush1.msra.mxu0 0.0
    %515 = vmatprep.subr.mxu0 0.0
    %516 = vmatpush1.msra.mxu0 0.0
    %517 = vmatprep.subr.mxu0 0.0
    %518 = vmatpush1.msra.mxu0 0.0
    %519 = vmatprep.subr.mxu0 0.0
    %520 = vmatpush1.msra.mxu0 0.0
    %521 = vmatprep.subr.mxu0 0.0
    %522 = vmatpush1.msra.mxu0 0.0
    %523 = vmatprep.subr.mxu0 0.0
    %524 = vmatpush1.msra.mxu0 0.0
    %525 = vmatprep.subr.mxu0 0.0
    %526 = vmatpush1.msra.mxu0 0.0
    %527 = vmatprep.subr.mxu0 0.0
    %528 = vmatpush1.msra.mxu0 0.0
    %529 = vmatprep.mubr.f32.mxu0 0.0
    %530 = vmatmul.mubr.f32.gmra.mrb[0].mxu0 %v463
    %v531 = vpop.f32.mrb[0].mxu0
    %v532 = vadd.f32 0.0, %v531
    %v533 = vpop.f32.mrb[0].mxu0
    %534 = vdwg.mxu0
    %v535 = vadd.f32 %v227, %v532
    %v536 = vxor.u32 %v535, 2147483648
    %v537 = vmul.f32 %v536, 1.442695
    %v538 = vpow.pop %v537
    %v539 = vadd.f32 %v538, 1.0
    %v540 = vrcp.pop %v539
    %v541 = vmul.f32 1.0, %v540
    %v542 = vtanh.pop %v535
    %v543 = vmul.f32 %v541, %v453
    %545 = vrot.lane.b32.xlu0 %v542, 32
    %v546 = vpop.permute.xlu0 %545
    %v548 = vmul.f32 %v541, %v546
    %550 = vrot.lane.b32.xlu0 %v548, 32
    %v551 = vpop.permute.xlu0 %550
    %v553 = vadd.f32 %v543, %v551
    %v554 = vtanh.pop %v553
    %556 = vrot.lane.b32.xlu0 %v554, 32
    %v557 = vpop.permute.xlu0 %556
    %v559 = vmul.f32 %v541, %v557
    %561 = vrot.lane.b32.xlu0 %v559, 64
    %v562 = vpop.permute.xlu0 %561
    %v563 = vsel %vm257, %v562, 0
    %565 = vmatprep.subr.mxu0 0.0
    %566 = vmatpush1.msra.mxu0 %v114
    %567 = vmatprep.subr.mxu0 0.0
    %568 = vmatpush1.msra.mxu0 %v115
    %569 = vmatprep.subr.mxu0 0.0
    %570 = vmatpush1.msra.mxu0 %v116
    %571 = vmatprep.subr.mxu0 0.0
    %572 = vmatpush1.msra.mxu0 %v117
    %573 = vmatprep.subr.mxu0 0.0
    %574 = vmatpush1.msra.mxu0 0.0
    %575 = vmatprep.subr.mxu0 0.0
    %576 = vmatpush1.msra.mxu0 0.0
    %577 = vmatprep.subr.mxu0 0.0
    %578 = vmatpush1.msra.mxu0 0.0
    %579 = vmatprep.subr.mxu0 0.0
    %580 = vmatpush1.msra.mxu0 0.0
    %581 = vmatprep.subr.mxu0 0.0
    %582 = vmatpush1.msra.mxu0 0.0
    %583 = vmatprep.subr.mxu0 0.0
    %584 = vmatpush1.msra.mxu0 0.0
    %585 = vmatprep.subr.mxu0 0.0
    %586 = vmatpush1.msra.mxu0 0.0
    %587 = vmatprep.subr.mxu0 0.0
    %588 = vmatpush1.msra.mxu0 0.0
    %589 = vmatprep.subr.mxu0 0.0
    %590 = vmatpush1.msra.mxu0 0.0
    %591 = vmatprep.subr.mxu0 0.0
    %592 = vmatpush1.msra.mxu0 0.0
    %593 = vmatprep.subr.mxu0 0.0
    %594 = vmatpush1.msra.mxu0 0.0
    %595 = vmatprep.subr.mxu0 0.0
    %596 = vmatpush1.msra.mxu0 0.0
    %597 = vmatprep.subr.mxu0 0.0
    %598 = vmatpush1.msra.mxu0 0.0
    %599 = vmatprep.subr.mxu0 0.0
    %600 = vmatpush1.msra.mxu0 0.0
    %601 = vmatprep.subr.mxu0 0.0
    %602 = vmatpush1.msra.mxu0 0.0
    %603 = vmatprep.subr.mxu0 0.0
    %604 = vmatpush1.msra.mxu0 0.0
    %605 = vmatprep.subr.mxu0 0.0
    %606 = vmatpush1.msra.mxu0 0.0
    %607 = vmatprep.subr.mxu0 0.0
    %608 = vmatpush1.msra.mxu0 0.0
    %609 = vmatprep.subr.mxu0 0.0
    %610 = vmatpush1.msra.mxu0 0.0
    %611 = vmatprep.subr.mxu0 0.0
    %612 = vmatpush1.msra.mxu0 0.0
    %613 = vmatprep.subr.mxu0 0.0
    %614 = vmatpush1.msra.mxu0 0.0
    %615 = vmatprep.subr.mxu0 0.0
    %616 = vmatpush1.msra.mxu0 0.0
    %617 = vmatprep.subr.mxu0 0.0
    %618 = vmatpush1.msra.mxu0 0.0
    %619 = vmatprep.subr.mxu0 0.0
    %620 = vmatpush1.msra.mxu0 0.0
    %621 = vmatprep.subr.mxu0 0.0
    %622 = vmatpush1.msra.mxu0 0.0
    %623 = vmatprep.subr.mxu0 0.0
    %624 = vmatpush1.msra.mxu0 0.0
    %625 = vmatprep.subr.mxu0 0.0
    %626 = vmatpush1.msra.mxu0 0.0
    %627 = vmatprep.subr.mxu0 0.0
    %628 = vmatpush1.msra.mxu0 0.0
    %629 = vmatprep.mubr.f32.mxu0 0.0
    %630 = vmatmul.mubr.f32.gmra.mrb[0].mxu0 %v563
    %v631 = vpop.f32.mrb[0].mxu0
    %v632 = vadd.f32 0.0, %v631
    %v633 = vpop.f32.mrb[0].mxu0
    %634 = vdwg.mxu0
    %v635 = vadd.f32 %v232, %v632
    %v636 = vxor.u32 %v635, 2147483648
    %v637 = vmul.f32 %v636, 1.442695
    %v638 = vpow.pop %v637
    %v639 = vadd.f32 %v638, 1.0
    %v640 = vrcp.pop %v639
    %v641 = vmul.f32 1.0, %v640
    %v642 = vtanh.pop %v635
    %v643 = vmul.f32 %v641, %v553
    %645 = vrot.lane.b32.xlu0 %v642, 32
    %v646 = vpop.permute.xlu0 %645
    %v648 = vmul.f32 %v641, %v646
    %650 = vrot.lane.b32.xlu0 %v648, 32
    %v651 = vpop.permute.xlu0 %650
    %v653 = vadd.f32 %v643, %v651
    %v654 = vtanh.pop %v653
    %656 = vrot.lane.b32.xlu0 %v654, 32
    %v657 = vpop.permute.xlu0 %656
    %v659 = vmul.f32 %v641, %v657
    %661 = vrot.lane.b32.xlu0 %v659, 64
    %v662 = vpop.permute.xlu0 %661
    %v663 = vsel %vm257, %v662, 0
    %665 = vmatprep.subr.mxu0 0.0
    %666 = vmatpush1.msra.mxu0 %v114
    %667 = vmatprep.subr.mxu0 0.0
    %668 = vmatpush1.msra.mxu0 %v115
    %669 = vmatprep.subr.mxu0 0.0
    %670 = vmatpush1.msra.mxu0 %v116
    %671 = vmatprep.subr.mxu0 0.0
    %672 = vmatpush1.msra.mxu0 %v117
    %673 = vmatprep.subr.mxu0 0.0
    %674 = vmatpush1.msra.mxu0 0.0
    %675 = vmatprep.subr.mxu0 0.0
    %676 = vmatpush1.msra.mxu0 0.0
    %677 = vmatprep.subr.mxu0 0.0
    %678 = vmatpush1.msra.mxu0 0.0
    %679 = vmatprep.subr.mxu0 0.0
    %680 = vmatpush1.msra.mxu0 0.0
    %681 = vmatprep.subr.mxu0 0.0
    %682 = vmatpush1.msra.mxu0 0.0
    %683 = vmatprep.subr.mxu0 0.0
    %684 = vmatpush1.msra.mxu0 0.0
    %685 = vmatprep.subr.mxu0 0.0
    %686 = vmatpush1.msra.mxu0 0.0
    %687 = vmatprep.subr.mxu0 0.0
    %688 = vmatpush1.msra.mxu0 0.0
    %689 = vmatprep.subr.mxu0 0.0
    %690 = vmatpush1.msra.mxu0 0.0
    %691 = vmatprep.subr.mxu0 0.0
    %692 = vmatpush1.msra.mxu0 0.0
    %693 = vmatprep.subr.mxu0 0.0
    %694 = vmatpush1.msra.mxu0 0.0
    %695 = vmatprep.subr.mxu0 0.0
    %696 = vmatpush1.msra.mxu0 0.0
    %697 = vmatprep.subr.mxu0 0.0
    %698 = vmatpush1.msra.mxu0 0.0
    %699 = vmatprep.subr.mxu0 0.0
    %700 = vmatpush1.msra.mxu0 0.0
    %701 = vmatprep.subr.mxu0 0.0
    %702 = vmatpush1.msra.mxu0 0.0
    %703 = vmatprep.subr.mxu0 0.0
    %704 = vmatpush1.msra.mxu0 0.0
    %705 = vmatprep.subr.mxu0 0.0
    %706 = vmatpush1.msra.mxu0 0.0
    %707 = vmatprep.subr.mxu0 0.0
    %708 = vmatpush1.msra.mxu0 0.0
    %709 = vmatprep.subr.mxu0 0.0
    %710 = vmatpush1.msra.mxu0 0.0
    %711 = vmatprep.subr.mxu0 0.0
    %712 = vmatpush1.msra.mxu0 0.0
    %713 = vmatprep.subr.mxu0 0.0
    %714 = vmatpush1.msra.mxu0 0.0
    %715 = vmatprep.subr.mxu0 0.0
    %716 = vmatpush1.msra.mxu0 0.0
    %717 = vmatprep.subr.mxu0 0.0
    %718 = vmatpush1.msra.mxu0 0.0
    %719 = vmatprep.subr.mxu0 0.0
    %720 = vmatpush1.msra.mxu0 0.0
    %721 = vmatprep.subr.mxu0 0.0
    %722 = vmatpush1.msra.mxu0 0.0
    %723 = vmatprep.subr.mxu0 0.0
    %724 = vmatpush1.msra.mxu0 0.0
    %725 = vmatprep.subr.mxu0 0.0
    %726 = vmatpush1.msra.mxu0 0.0
    %727 = vmatprep.subr.mxu0 0.0
    %728 = vmatpush1.msra.mxu0 0.0
    %729 = vmatprep.mubr.f32.mxu0 0.0
    %730 = vmatmul.mubr.f32.gmra.mrb[0].mxu0 %v663
    %v731 = vpop.f32.mrb[0].mxu0
    %v732 = vadd.f32 0.0, %v731
    %v733 = vpop.f32.mrb[0].mxu0
    %734 = vdwg.mxu0
    %v735 = vadd.f32 %v237, %v732
    %v736 = vxor.u32 %v735, 2147483648
    %v737 = vmul.f32 %v736, 1.442695
    %v738 = vpow.pop %v737
    %v739 = vadd.f32 %v738, 1.0
    %v740 = vrcp.pop %v739
    %v741 = vmul.f32 1.0, %v740
    %v742 = vtanh.pop %v735
    %v743 = vmul.f32 %v741, %v653
    %745 = vrot.lane.b32.xlu0 %v742, 32
    %v746 = vpop.permute.xlu0 %745
    %v748 = vmul.f32 %v741, %v746
    %750 = vrot.lane.b32.xlu0 %v748, 32
    %v751 = vpop.permute.xlu0 %750
    %v753 = vadd.f32 %v743, %v751
    %v754 = vtanh.pop %v753
    %756 = vrot.lane.b32.xlu0 %v754, 32
    %v757 = vpop.permute.xlu0 %756
    %v759 = vmul.f32 %v741, %v757
    %761 = vrot.lane.b32.xlu0 %v759, 64
    %v762 = vpop.permute.xlu0 %761
    %v763 = vsel %vm257, %v762, 0
    %765 = vmatprep.subr.mxu0 0.0
    %766 = vmatpush1.msra.mxu0 %v114
    %767 = vmatprep.subr.mxu0 0.0
    %768 = vmatpush1.msra.mxu0 %v115
    %769 = vmatprep.subr.mxu0 0.0
    %770 = vmatpush1.msra.mxu0 %v116
    %771 = vmatprep.subr.mxu0 0.0
    %772 = vmatpush1.msra.mxu0 %v117
    %773 = vmatprep.subr.mxu0 0.0
    %774 = vmatpush1.msra.mxu0 0.0
    %775 = vmatprep.subr.mxu0 0.0
    %776 = vmatpush1.msra.mxu0 0.0
    %777 = vmatprep.subr.mxu0 0.0
    %778 = vmatpush1.msra.mxu0 0.0
    %779 = vmatprep.subr.mxu0 0.0
    %780 = vmatpush1.msra.mxu0 0.0
    %781 = vmatprep.subr.mxu0 0.0
    %782 = vmatpush1.msra.mxu0 0.0
    %783 = vmatprep.subr.mxu0 0.0
    %784 = vmatpush1.msra.mxu0 0.0
    %785 = vmatprep.subr.mxu0 0.0
    %786 = vmatpush1.msra.mxu0 0.0
    %787 = vmatprep.subr.mxu0 0.0
    %788 = vmatpush1.msra.mxu0 0.0
    %789 = vmatprep.subr.mxu0 0.0
    %790 = vmatpush1.msra.mxu0 0.0
    %791 = vmatprep.subr.mxu0 0.0
    %792 = vmatpush1.msra.mxu0 0.0
    %793 = vmatprep.subr.mxu0 0.0
    %794 = vmatpush1.msra.mxu0 0.0
    %795 = vmatprep.subr.mxu0 0.0
    %796 = vmatpush1.msra.mxu0 0.0
    %797 = vmatprep.subr.mxu0 0.0
    %798 = vmatpush1.msra.mxu0 0.0
    %799 = vmatprep.subr.mxu0 0.0
    %800 = vmatpush1.msra.mxu0 0.0
    %801 = vmatprep.subr.mxu0 0.0
    %802 = vmatpush1.msra.mxu0 0.0
    %803 = vmatprep.subr.mxu0 0.0
    %804 = vmatpush1.msra.mxu0 0.0
    %805 = vmatprep.subr.mxu0 0.0
    %806 = vmatpush1.msra.mxu0 0.0
    %807 = vmatprep.subr.mxu0 0.0
    %808 = vmatpush1.msra.mxu0 0.0
    %809 = vmatprep.subr.mxu0 0.0
    %810 = vmatpush1.msra.mxu0 0.0
    %811 = vmatprep.subr.mxu0 0.0
    %812 = vmatpush1.msra.mxu0 0.0
    %813 = vmatprep.subr.mxu0 0.0
    %814 = vmatpush1.msra.mxu0 0.0
    %815 = vmatprep.subr.mxu0 0.0
    %816 = vmatpush1.msra.mxu0 0.0
    %817 = vmatprep.subr.mxu0 0.0
    %818 = vmatpush1.msra.mxu0 0.0
    %819 = vmatprep.subr.mxu0 0.0
    %820 = vmatpush1.msra.mxu0 0.0
    %821 = vmatprep.subr.mxu0 0.0
    %822 = vmatpush1.msra.mxu0 0.0
    %823 = vmatprep.subr.mxu0 0.0
    %824 = vmatpush1.msra.mxu0 0.0
    %825 = vmatprep.subr.mxu0 0.0
    %826 = vmatpush1.msra.mxu0 0.0
    %827 = vmatprep.subr.mxu0 0.0
    %828 = vmatpush1.msra.mxu0 0.0
    %829 = vmatprep.mubr.f32.mxu0 0.0
    %830 = vmatmul.mubr.f32.gmra.mrb[0].mxu0 %v763
    %v831 = vpop.f32.mrb[0].mxu0
    %v832 = vadd.f32 0.0, %v831
    %v833 = vpop.f32.mrb[0].mxu0
    %834 = vdwg.mxu0
    %v835 = vadd.f32 %v242, %v832
    %v836 = vxor.u32 %v835, 2147483648
    %v837 = vmul.f32 %v836, 1.442695
    %v838 = vpow.pop %v837
    %v839 = vadd.f32 %v838, 1.0
    %v840 = vrcp.pop %v839
    %v841 = vmul.f32 1.0, %v840
    %v842 = vtanh.pop %v835
    %v843 = vmul.f32 %v841, %v753
    %845 = vrot.lane.b32.xlu0 %v842, 32
    %v846 = vpop.permute.xlu0 %845
    %v848 = vmul.f32 %v841, %v846
    %850 = vrot.lane.b32.xlu0 %v848, 32
    %v851 = vpop.permute.xlu0 %850
    %v853 = vadd.f32 %v843, %v851
    %v854 = vtanh.pop %v853
    %856 = vrot.lane.b32.xlu0 %v854, 32
    %v857 = vpop.permute.xlu0 %856
    %v859 = vmul.f32 %v841, %v857
    %861 = vrot.lane.b32.xlu0 %v859, 64
    %v862 = vpop.permute.xlu0 %861
    %v863 = vsel %vm257, %v862, 0
    %865 = vmatprep.subr.mxu0 0.0
    %866 = vmatpush1.msra.mxu0 %v114
    %867 = vmatprep.subr.mxu0 0.0
    %868 = vmatpush1.msra.mxu0 %v115
    %869 = vmatprep.subr.mxu0 0.0
    %870 = vmatpush1.msra.mxu0 %v116
    %871 = vmatprep.subr.mxu0 0.0
    %872 = vmatpush1.msra.mxu0 %v117
    %873 = vmatprep.subr.mxu0 0.0
    %874 = vmatpush1.msra.mxu0 0.0
    %875 = vmatprep.subr.mxu0 0.0
    %876 = vmatpush1.msra.mxu0 0.0
    %877 = vmatprep.subr.mxu0 0.0
    %878 = vmatpush1.msra.mxu0 0.0
    %879 = vmatprep.subr.mxu0 0.0
    %880 = vmatpush1.msra.mxu0 0.0
    %881 = vmatprep.subr.mxu0 0.0
    %882 = vmatpush1.msra.mxu0 0.0
    %883 = vmatprep.subr.mxu0 0.0
    %884 = vmatpush1.msra.mxu0 0.0
    %885 = vmatprep.subr.mxu0 0.0
    %886 = vmatpush1.msra.mxu0 0.0
    %887 = vmatprep.subr.mxu0 0.0
    %888 = vmatpush1.msra.mxu0 0.0
    %889 = vmatprep.subr.mxu0 0.0
    %890 = vmatpush1.msra.mxu0 0.0
    %891 = vmatprep.subr.mxu0 0.0
    %892 = vmatpush1.msra.mxu0 0.0
    %893 = vmatprep.subr.mxu0 0.0
    %894 = vmatpush1.msra.mxu0 0.0
    %895 = vmatprep.subr.mxu0 0.0
    %896 = vmatpush1.msra.mxu0 0.0
    %897 = vmatprep.subr.mxu0 0.0
    %898 = vmatpush1.msra.mxu0 0.0
    %899 = vmatprep.subr.mxu0 0.0
    %900 = vmatpush1.msra.mxu0 0.0
    %901 = vmatprep.subr.mxu0 0.0
    %902 = vmatpush1.msra.mxu0 0.0
    %903 = vmatprep.subr.mxu0 0.0
    %904 = vmatpush1.msra.mxu0 0.0
    %905 = vmatprep.subr.mxu0 0.0
    %906 = vmatpush1.msra.mxu0 0.0
    %907 = vmatprep.subr.mxu0 0.0
    %908 = vmatpush1.msra.mxu0 0.0
    %909 = vmatprep.subr.mxu0 0.0
    %910 = vmatpush1.msra.mxu0 0.0
    %911 = vmatprep.subr.mxu0 0.0
    %912 = vmatpush1.msra.mxu0 0.0
    %913 = vmatprep.subr.mxu0 0.0
    %914 = vmatpush1.msra.mxu0 0.0
    %915 = vmatprep.subr.mxu0 0.0
    %916 = vmatpush1.msra.mxu0 0.0
    %917 = vmatprep.subr.mxu0 0.0
    %918 = vmatpush1.msra.mxu0 0.0
    %919 = vmatprep.subr.mxu0 0.0
    %920 = vmatpush1.msra.mxu0 0.0
    %921 = vmatprep.subr.mxu0 0.0
    %922 = vmatpush1.msra.mxu0 0.0
    %923 = vmatprep.subr.mxu0 0.0
    %924 = vmatpush1.msra.mxu0 0.0
    %925 = vmatprep.subr.mxu0 0.0
    %926 = vmatpush1.msra.mxu0 0.0
    %927 = vmatprep.subr.mxu0 0.0
    %928 = vmatpush1.msra.mxu0 0.0
    %929 = vmatprep.mubr.f32.mxu0 0.0
    %930 = vmatmul.mubr.f32.gmra.mrb[0].mxu0 %v863
    %v931 = vpop.f32.mrb[0].mxu0
    %v932 = vadd.f32 0.0, %v931
    %v933 = vpop.f32.mrb[0].mxu0
    %934 = vdwg.mxu0
    %v935 = vadd.f32 %v247, %v932
    %v936 = vxor.u32 %v935, 2147483648
    %v937 = vmul.f32 %v936, 1.442695
    %v938 = vpow.pop %v937
    %v939 = vadd.f32 %v938, 1.0
    %v940 = vrcp.pop %v939
    %v941 = vmul.f32 1.0, %v940
    %v942 = vtanh.pop %v935
    %v943 = vmul.f32 %v941, %v853
    %945 = vrot.lane.b32.xlu0 %v942, 32
    %v946 = vpop.permute.xlu0 %945
    %v948 = vmul.f32 %v941, %v946
    %950 = vrot.lane.b32.xlu0 %v948, 32
    %v951 = vpop.permute.xlu0 %950
    %v953 = vadd.f32 %v943, %v951
    %v954 = vtanh.pop %v953
    %956 = vrot.lane.b32.xlu0 %v954, 32
    %v957 = vpop.permute.xlu0 %956
    %v959 = vmul.f32 %v941, %v957
    %961 = vrot.lane.b32.xlu0 %v959, 64
    %v962 = vpop.permute.xlu0 %961
    %v963 = vsel %vm257, %v962, 0
    %965 = vmatprep.subr.mxu0 0.0
    %966 = vmatpush1.msra.mxu0 %v114
    %967 = vmatprep.subr.mxu0 0.0
    %968 = vmatpush1.msra.mxu0 %v115
    %969 = vmatprep.subr.mxu0 0.0
    %970 = vmatpush1.msra.mxu0 %v116
    %971 = vmatprep.subr.mxu0 0.0
    %972 = vmatpush1.msra.mxu0 %v117
    %973 = vmatprep.subr.mxu0 0.0
    %974 = vmatpush1.msra.mxu0 0.0
    %975 = vmatprep.subr.mxu0 0.0
    %976 = vmatpush1.msra.mxu0 0.0
    %977 = vmatprep.subr.mxu0 0.0
    %978 = vmatpush1.msra.mxu0 0.0
    %979 = vmatprep.subr.mxu0 0.0
    %980 = vmatpush1.msra.mxu0 0.0
    %981 = vmatprep.subr.mxu0 0.0
    %982 = vmatpush1.msra.mxu0 0.0
    %983 = vmatprep.subr.mxu0 0.0
    %984 = vmatpush1.msra.mxu0 0.0
    %985 = vmatprep.subr.mxu0 0.0
    %986 = vmatpush1.msra.mxu0 0.0
    %987 = vmatprep.subr.mxu0 0.0
    %988 = vmatpush1.msra.mxu0 0.0
    %989 = vmatprep.subr.mxu0 0.0
    %990 = vmatpush1.msra.mxu0 0.0
    %991 = vmatprep.subr.mxu0 0.0
    %992 = vmatpush1.msra.mxu0 0.0
    %993 = vmatprep.subr.mxu0 0.0
    %994 = vmatpush1.msra.mxu0 0.0
    %995 = vmatprep.subr.mxu0 0.0
    %996 = vmatpush1.msra.mxu0 0.0
    %997 = vmatprep.subr.mxu0 0.0
    %998 = vmatpush1.msra.mxu0 0.0
    %999 = vmatprep.subr.mxu0 0.0
    %1000 = vmatpush1.msra.mxu0 0.0
    %1001 = vmatprep.subr.mxu0 0.0
    %1002 = vmatpush1.msra.mxu0 0.0
    %1003 = vmatprep.subr.mxu0 0.0
    %1004 = vmatpush1.msra.mxu0 0.0
    %1005 = vmatprep.subr.mxu0 0.0
    %1006 = vmatpush1.msra.mxu0 0.0
    %1007 = vmatprep.subr.mxu0 0.0
    %1008 = vmatpush1.msra.mxu0 0.0
    %1009 = vmatprep.subr.mxu0 0.0
    %1010 = vmatpush1.msra.mxu0 0.0
    %1011 = vmatprep.subr.mxu0 0.0
    %1012 = vmatpush1.msra.mxu0 0.0
    %1013 = vmatprep.subr.mxu0 0.0
    %1014 = vmatpush1.msra.mxu0 0.0
    %1015 = vmatprep.subr.mxu0 0.0
    %1016 = vmatpush1.msra.mxu0 0.0
    %1017 = vmatprep.subr.mxu0 0.0
    %1018 = vmatpush1.msra.mxu0 0.0
    %1019 = vmatprep.subr.mxu0 0.0
    %1020 = vmatpush1.msra.mxu0 0.0
    %1021 = vmatprep.subr.mxu0 0.0
    %1022 = vmatpush1.msra.mxu0 0.0
    %1023 = vmatprep.subr.mxu0 0.0
    %1024 = vmatpush1.msra.mxu0 0.0
    %1025 = vmatprep.subr.mxu0 0.0
    %1026 = vmatpush1.msra.mxu0 0.0
    %1027 = vmatprep.subr.mxu0 0.0
    %1028 = vmatpush1.msra.mxu0 0.0
    %1029 = vmatprep.mubr.f32.mxu0 0.0
    %1030 = vmatmul.mubr.f32.gmra.mrb[0].mxu0 %v963
    %v1031 = vpop.f32.mrb[0].mxu0
    %v1032 = vadd.f32 0.0, %v1031
    %v1033 = vpop.f32.mrb[0].mxu0
    %1034 = vdwg.mxu0
    %v1035 = vadd.f32 %v252, %v1032
    %v1036 = vxor.u32 %v1035, 2147483648
    %v1037 = vmul.f32 %v1036, 1.442695
    %v1038 = vpow.pop %v1037
    %v1039 = vadd.f32 %v1038, 1.0
    %v1040 = vrcp.pop %v1039
    %v1041 = vmul.f32 1.0, %v1040
    %v1042 = vtanh.pop %v1035
    %v1043 = vmul.f32 %v1041, %v953
    %1045 = vrot.lane.b32.xlu0 %v1042, 32
    %v1046 = vpop.permute.xlu0 %1045
    %v1048 = vmul.f32 %v1041, %v1046
    %1050 = vrot.lane.b32.xlu0 %v1048, 32
    %v1051 = vpop.permute.xlu0 %1050
    %v1053 = vadd.f32 %v1043, %v1051
    %v1054 = vtanh.pop %v1053
    %1056 = vrot.lane.b32.xlu0 %v1054, 32
    %v1057 = vpop.permute.xlu0 %1056
    %v1059 = vmul.f32 %v1041, %v1057
    %1061 = vrot.lane.b32.xlu0 %v1059, 64
    %v1062 = vpop.permute.xlu0 %1061
    %1064 = vst.msk [vmem:[#allocation2] sm:$0xff] %vm257, %v1062
    %1066 = vrot.lane.b32.xlu0 %v1053, 96
    %v1067 = vpop.permute.xlu0 %1066
    %1069 = vst.msk [vmem:[#allocation3] sm:$0xff] %vm257, %v1067
    %v1070 = vld [vmem:[#allocation10] sm:$0xff]
    %v1071 = vld [vmem:[#allocation10 + $0x8] sm:$0xff]
    %v1072 = vld [vmem:[#allocation10 + $0x10] sm:$0xff]
    %v1073 = vld [vmem:[#allocation10 + $0x18] sm:$0xff]
    %v1074 = vld [vmem:[#allocation12] sm:$0xff]
    %v1075 = vld [vmem:[#allocation12 + $0x8] sm:$0xff]
    %v1076 = vld [vmem:[#allocation12 + $0x10] sm:$0xff]
    %v1077 = vld [vmem:[#allocation12 + $0x18] sm:$0xff]
    %v1078 = vld [vmem:[%s6] sm:$0x1]
    %v1080 = vlaneseq
    %v1081 = vshrl.u32 %v1080, 7
    %v1082 = vsub.s32 0, %v1081
    %v1083 = vrot.slane %v1078, %v1082
    %v1085 = vsel %vm257, %v1062, 0
    %1087 = vmatprep.subr.mxu0 0.0
    %1088 = vmatpush1.msra.mxu0 %v1070
    %1089 = vmatprep.subr.mxu0 0.0
    %1090 = vmatpush1.msra.mxu0 %v1071
    %1091 = vmatprep.subr.mxu0 0.0
    %1092 = vmatpush1.msra.mxu0 %v1072
    %1093 = vmatprep.subr.mxu0 0.0
    %1094 = vmatpush1.msra.mxu0 %v1073
    %1095 = vmatprep.subr.mxu0 0.0
    %1096 = vmatpush1.msra.mxu0 0.0
    %1097 = vmatprep.subr.mxu0 0.0
    %1098 = vmatpush1.msra.mxu0 0.0
    %1099 = vmatprep.subr.mxu0 0.0
    %1100 = vmatpush1.msra.mxu0 0.0
    %1101 = vmatprep.subr.mxu0 0.0
    %1102 = vmatpush1.msra.mxu0 0.0
    %1103 = vmatprep.subr.mxu0 0.0
    %1104 = vmatpush1.msra.mxu0 0.0
    %1105 = vmatprep.subr.mxu0 0.0
    %1106 = vmatpush1.msra.mxu0 0.0
    %1107 = vmatprep.subr.mxu0 0.0
    %1108 = vmatpush1.msra.mxu0 0.0
    %1109 = vmatprep.subr.mxu0 0.0
    %1110 = vmatpush1.msra.mxu0 0.0
    %1111 = vmatprep.subr.mxu0 0.0
    %1112 = vmatpush1.msra.mxu0 0.0
    %1113 = vmatprep.subr.mxu0 0.0
    %1114 = vmatpush1.msra.mxu0 0.0
    %1115 = vmatprep.subr.mxu0 0.0
    %1116 = vmatpush1.msra.mxu0 0.0
    %1117 = vmatprep.subr.mxu0 0.0
    %1118 = vmatpush1.msra.mxu0 0.0
    %1119 = vmatprep.subr.mxu0 0.0
    %1120 = vmatpush1.msra.mxu0 0.0
    %1121 = vmatprep.subr.mxu0 0.0
    %1122 = vmatpush1.msra.mxu0 0.0
    %1123 = vmatprep.subr.mxu0 0.0
    %1124 = vmatpush1.msra.mxu0 0.0
    %1125 = vmatprep.subr.mxu0 0.0
    %1126 = vmatpush1.msra.mxu0 0.0
    %1127 = vmatprep.subr.mxu0 0.0
    %1128 = vmatpush1.msra.mxu0 0.0
    %1129 = vmatprep.subr.mxu0 0.0
    %1130 = vmatpush1.msra.mxu0 0.0
    %1131 = vmatprep.subr.mxu0 0.0
    %1132 = vmatpush1.msra.mxu0 0.0
    %1133 = vmatprep.subr.mxu0 0.0
    %1134 = vmatpush1.msra.mxu0 0.0
    %1135 = vmatprep.subr.mxu0 0.0
    %1136 = vmatpush1.msra.mxu0 0.0
    %1137 = vmatprep.subr.mxu0 0.0
    %1138 = vmatpush1.msra.mxu0 0.0
    %1139 = vmatprep.subr.mxu0 0.0
    %1140 = vmatpush1.msra.mxu0 0.0
    %1141 = vmatprep.subr.mxu0 0.0
    %1142 = vmatpush1.msra.mxu0 0.0
    %1143 = vmatprep.subr.mxu0 0.0
    %1144 = vmatpush1.msra.mxu0 0.0
    %1145 = vmatprep.subr.mxu0 0.0
    %1146 = vmatpush1.msra.mxu0 0.0
    %1147 = vmatprep.subr.mxu0 0.0
    %1148 = vmatpush1.msra.mxu0 0.0
    %1149 = vmatprep.subr.mxu0 0.0
    %1150 = vmatpush1.msra.mxu0 0.0
    %1151 = vmatprep.mubr.f32.mxu0 0.0
    %1152 = vmatmul.mubr.f32.gmra.mrb[0].mxu0 %v363
    %v1153 = vpop.f32.mrb[0].mxu0
    %v1154 = vadd.f32 %v1083, %v1153
    %v1155 = vpop.f32.mrb[0].mxu0
    %1156 = vmatprep.mubr.f32.mxu0 0.0
    %1157 = vmatmul.mubr.f32.gmra.mrb[0].mxu0 %v463
    %v1158 = vpop.f32.mrb[0].mxu0
    %v1159 = vadd.f32 %v1083, %v1158
    %v1160 = vpop.f32.mrb[0].mxu0
    %1161 = vmatprep.mubr.f32.mxu0 0.0
    %1162 = vmatmul.mubr.f32.gmra.mrb[0].mxu0 %v563
    %v1163 = vpop.f32.mrb[0].mxu0
    %v1164 = vadd.f32 %v1083, %v1163
    %v1165 = vpop.f32.mrb[0].mxu0
    %1166 = vmatprep.mubr.f32.mxu0 0.0
    %1167 = vmatmul.mubr.f32.gmra.mrb[0].mxu0 %v663
    %v1168 = vpop.f32.mrb[0].mxu0
    %v1169 = vadd.f32 %v1083, %v1168
    %v1170 = vpop.f32.mrb[0].mxu0
    %1171 = vmatprep.mubr.f32.mxu0 0.0
    %1172 = vmatmul.mubr.f32.gmra.mrb[0].mxu0 %v763
    %v1173 = vpop.f32.mrb[0].mxu0
    %v1174 = vadd.f32 %v1083, %v1173
    %v1175 = vpop.f32.mrb[0].mxu0
    %1176 = vmatprep.mubr.f32.mxu0 0.0
    %1177 = vmatmul.mubr.f32.gmra.mrb[0].mxu0 %v863
    %v1178 = vpop.f32.mrb[0].mxu0
    %v1179 = vadd.f32 %v1083, %v1178
    %v1180 = vpop.f32.mrb[0].mxu0
    %1181 = vmatprep.mubr.f32.mxu0 0.0
    %1182 = vmatmul.mubr.f32.gmra.mrb[0].mxu0 %v963
    %v1183 = vpop.f32.mrb[0].mxu0
    %v1184 = vadd.f32 %v1083, %v1183
    %v1185 = vpop.f32.mrb[0].mxu0
    %1186 = vmatprep.mubr.f32.mxu0 0.0
    %1187 = vmatmul.mubr.f32.gmra.mrb[0].mxu0 %v1085
    %v1188 = vpop.f32.mrb[0].mxu0
    %v1189 = vadd.f32 %v1083, %v1188
    %v1190 = vpop.f32.mrb[0].mxu0
    %1191 = vdwg.mxu0
    %s1192 = scalar_lea.vmem [#allocation2], 8
    %v1193 = vld [vmem:[%s1192] sm:$0xff]
    %s1194 = scalar_lea.vmem [#allocation3], 8
    %v1195 = vld [vmem:[%s1194] sm:$0xff]
    %v1197 = vsel %vm257, %v1193, 0
    %1199 = vmatprep.subr.mxu0 0.0
    %1200 = vmatpush1.msra.mxu0 %v1074
    %1201 = vmatprep.subr.mxu0 0.0
    %1202 = vmatpush1.msra.mxu0 %v1075
    %1203 = vmatprep.subr.mxu0 0.0
    %1204 = vmatpush1.msra.mxu0 %v1076
    %1205 = vmatprep.subr.mxu0 0.0
    %1206 = vmatpush1.msra.mxu0 %v1077
    %1207 = vmatprep.subr.mxu0 0.0
    %1208 = vmatpush1.msra.mxu0 0.0
    %1209 = vmatprep.subr.mxu0 0.0
    %1210 = vmatpush1.msra.mxu0 0.0
    %1211 = vmatprep.subr.mxu0 0.0
    %1212 = vmatpush1.msra.mxu0 0.0
    %1213 = vmatprep.subr.mxu0 0.0
    %1214 = vmatpush1.msra.mxu0 0.0
    %1215 = vmatprep.subr.mxu0 0.0
    %1216 = vmatpush1.msra.mxu0 0.0
    %1217 = vmatprep.subr.mxu0 0.0
    %1218 = vmatpush1.msra.mxu0 0.0
    %1219 = vmatprep.subr.mxu0 0.0
    %1220 = vmatpush1.msra.mxu0 0.0
    %1221 = vmatprep.subr.mxu0 0.0
    %1222 = vmatpush1.msra.mxu0 0.0
    %1223 = vmatprep.subr.mxu0 0.0
    %1224 = vmatpush1.msra.mxu0 0.0
    %1225 = vmatprep.subr.mxu0 0.0
    %1226 = vmatpush1.msra.mxu0 0.0
    %1227 = vmatprep.subr.mxu0 0.0
    %1228 = vmatpush1.msra.mxu0 0.0
    %1229 = vmatprep.subr.mxu0 0.0
    %1230 = vmatpush1.msra.mxu0 0.0
    %1231 = vmatprep.subr.mxu0 0.0
    %1232 = vmatpush1.msra.mxu0 0.0
    %1233 = vmatprep.subr.mxu0 0.0
    %1234 = vmatpush1.msra.mxu0 0.0
    %1235 = vmatprep.subr.mxu0 0.0
    %1236 = vmatpush1.msra.mxu0 0.0
    %1237 = vmatprep.subr.mxu0 0.0
    %1238 = vmatpush1.msra.mxu0 0.0
    %1239 = vmatprep.subr.mxu0 0.0
    %1240 = vmatpush1.msra.mxu0 0.0
    %1241 = vmatprep.subr.mxu0 0.0
    %1242 = vmatpush1.msra.mxu0 0.0
    %1243 = vmatprep.subr.mxu0 0.0
    %1244 = vmatpush1.msra.mxu0 0.0
    %1245 = vmatprep.subr.mxu0 0.0
    %1246 = vmatpush1.msra.mxu0 0.0
    %1247 = vmatprep.subr.mxu0 0.0
    %1248 = vmatpush1.msra.mxu0 0.0
    %1249 = vmatprep.subr.mxu0 0.0
    %1250 = vmatpush1.msra.mxu0 0.0
    %1251 = vmatprep.subr.mxu0 0.0
    %1252 = vmatpush1.msra.mxu0 0.0
    %1253 = vmatprep.subr.mxu0 0.0
    %1254 = vmatpush1.msra.mxu0 0.0
    %1255 = vmatprep.subr.mxu0 0.0
    %1256 = vmatpush1.msra.mxu0 0.0
    %1257 = vmatprep.subr.mxu0 0.0
    %1258 = vmatpush1.msra.mxu0 0.0
    %1259 = vmatprep.subr.mxu0 0.0
    %1260 = vmatpush1.msra.mxu0 0.0
    %1261 = vmatprep.subr.mxu0 0.0
    %1262 = vmatpush1.msra.mxu0 0.0
    %1263 = vmatprep.mubr.f32.mxu0 0.0
    %1264 = vmatmul.mubr.f32.gmra.mrb[0].mxu0 %v1197
    %v1265 = vpop.f32.mrb[0].mxu0
    %v1266 = vadd.f32 0.0, %v1265
    %v1267 = vpop.f32.mrb[0].mxu0
    %1268 = vdwg.mxu0
    %v1269 = vadd.f32 %v1154, %v1266
    %v1270 = vxor.u32 %v1269, 2147483648
    %v1271 = vmul.f32 %v1270, 1.442695
    %v1272 = vpow.pop %v1271
    %v1273 = vadd.f32 %v1272, 1.0
    %v1274 = vrcp.pop %v1273
    %v1275 = vmul.f32 1.0, %v1274
    %v1276 = vtanh.pop %v1269
    %1278 = vrot.lane.b32.xlu0 %v1195, 32
    %v1279 = vpop.permute.xlu0 %1278
    %v1281 = vmul.f32 %v1275, %v1279
    %1283 = vrot.lane.b32.xlu0 %v1276, 32
    %v1284 = vpop.permute.xlu0 %1283
    %v1286 = vmul.f32 %v1275, %v1284
    %1288 = vrot.lane.b32.xlu0 %v1286, 32
    %v1289 = vpop.permute.xlu0 %1288
    %v1291 = vadd.f32 %v1281, %v1289
    %v1292 = vtanh.pop %v1291
    %1294 = vrot.lane.b32.xlu0 %v1292, 32
    %v1295 = vpop.permute.xlu0 %1294
    %v1297 = vmul.f32 %v1275, %v1295
    %1299 = vrot.lane.b32.xlu0 %v1297, 64
    %v1300 = vpop.permute.xlu0 %1299
    %v1301 = vsel %vm257, %v1300, 0
    %1303 = vmatprep.subr.mxu0 0.0
    %1304 = vmatpush1.msra.mxu0 %v1074
    %1305 = vmatprep.subr.mxu0 0.0
    %1306 = vmatpush1.msra.mxu0 %v1075
    %1307 = vmatprep.subr.mxu0 0.0
    %1308 = vmatpush1.msra.mxu0 %v1076
    %1309 = vmatprep.subr.mxu0 0.0
    %1310 = vmatpush1.msra.mxu0 %v1077
    %1311 = vmatprep.subr.mxu0 0.0
    %1312 = vmatpush1.msra.mxu0 0.0
    %1313 = vmatprep.subr.mxu0 0.0
    %1314 = vmatpush1.msra.mxu0 0.0
    %1315 = vmatprep.subr.mxu0 0.0
    %1316 = vmatpush1.msra.mxu0 0.0
    %1317 = vmatprep.subr.mxu0 0.0
    %1318 = vmatpush1.msra.mxu0 0.0
    %1319 = vmatprep.subr.mxu0 0.0
    %1320 = vmatpush1.msra.mxu0 0.0
    %1321 = vmatprep.subr.mxu0 0.0
    %1322 = vmatpush1.msra.mxu0 0.0
    %1323 = vmatprep.subr.mxu0 0.0
    %1324 = vmatpush1.msra.mxu0 0.0
    %1325 = vmatprep.subr.mxu0 0.0
    %1326 = vmatpush1.msra.mxu0 0.0
    %1327 = vmatprep.subr.mxu0 0.0
    %1328 = vmatpush1.msra.mxu0 0.0
    %1329 = vmatprep.subr.mxu0 0.0
    %1330 = vmatpush1.msra.mxu0 0.0
    %1331 = vmatprep.subr.mxu0 0.0
    %1332 = vmatpush1.msra.mxu0 0.0
    %1333 = vmatprep.subr.mxu0 0.0
    %1334 = vmatpush1.msra.mxu0 0.0
    %1335 = vmatprep.subr.mxu0 0.0
    %1336 = vmatpush1.msra.mxu0 0.0
    %1337 = vmatprep.subr.mxu0 0.0
    %1338 = vmatpush1.msra.mxu0 0.0
    %1339 = vmatprep.subr.mxu0 0.0
    %1340 = vmatpush1.msra.mxu0 0.0
    %1341 = vmatprep.subr.mxu0 0.0
    %1342 = vmatpush1.msra.mxu0 0.0
    %1343 = vmatprep.subr.mxu0 0.0
    %1344 = vmatpush1.msra.mxu0 0.0
    %1345 = vmatprep.subr.mxu0 0.0
    %1346 = vmatpush1.msra.mxu0 0.0
    %1347 = vmatprep.subr.mxu0 0.0
    %1348 = vmatpush1.msra.mxu0 0.0
    %1349 = vmatprep.subr.mxu0 0.0
    %1350 = vmatpush1.msra.mxu0 0.0
    %1351 = vmatprep.subr.mxu0 0.0
    %1352 = vmatpush1.msra.mxu0 0.0
    %1353 = vmatprep.subr.mxu0 0.0
    %1354 = vmatpush1.msra.mxu0 0.0
    %1355 = vmatprep.subr.mxu0 0.0
    %1356 = vmatpush1.msra.mxu0 0.0
    %1357 = vmatprep.subr.mxu0 0.0
    %1358 = vmatpush1.msra.mxu0 0.0
    %1359 = vmatprep.subr.mxu0 0.0
    %1360 = vmatpush1.msra.mxu0 0.0
    %1361 = vmatprep.subr.mxu0 0.0
    %1362 = vmatpush1.msra.mxu0 0.0
    %1363 = vmatprep.subr.mxu0 0.0
    %1364 = vmatpush1.msra.mxu0 0.0
    %1365 = vmatprep.subr.mxu0 0.0
    %1366 = vmatpush1.msra.mxu0 0.0
    %1367 = vmatprep.mubr.f32.mxu0 0.0
    %1368 = vmatmul.mubr.f32.gmra.mrb[0].mxu0 %v1301
    %v1369 = vpop.f32.mrb[0].mxu0
    %v1370 = vadd.f32 0.0, %v1369
    %v1371 = vpop.f32.mrb[0].mxu0
    %1372 = vdwg.mxu0
    %v1373 = vadd.f32 %v1159, %v1370
    %v1374 = vxor.u32 %v1373, 2147483648
    %v1375 = vmul.f32 %v1374, 1.442695
    %v1376 = vpow.pop %v1375
    %v1377 = vadd.f32 %v1376, 1.0
    %v1378 = vrcp.pop %v1377
    %v1379 = vmul.f32 1.0, %v1378
    %v1380 = vtanh.pop %v1373
    %v1381 = vmul.f32 %v1379, %v1291
    %1383 = vrot.lane.b32.xlu0 %v1380, 32
    %v1384 = vpop.permute.xlu0 %1383
    %v1386 = vmul.f32 %v1379, %v1384
    %1388 = vrot.lane.b32.xlu0 %v1386, 32
    %v1389 = vpop.permute.xlu0 %1388
    %v1391 = vadd.f32 %v1381, %v1389
    %v1392 = vtanh.pop %v1391
    %1394 = vrot.lane.b32.xlu0 %v1392, 32
    %v1395 = vpop.permute.xlu0 %1394
    %v1397 = vmul.f32 %v1379, %v1395
    %1399 = vrot.lane.b32.xlu0 %v1397, 64
    %v1400 = vpop.permute.xlu0 %1399
    %v1401 = vsel %vm257, %v1400, 0
    %1403 = vmatprep.subr.mxu0 0.0
    %1404 = vmatpush1.msra.mxu0 %v1074
    %1405 = vmatprep.subr.mxu0 0.0
    %1406 = vmatpush1.msra.mxu0 %v1075
    %1407 = vmatprep.subr.mxu0 0.0
    %1408 = vmatpush1.msra.mxu0 %v1076
    %1409 = vmatprep.subr.mxu0 0.0
    %1410 = vmatpush1.msra.mxu0 %v1077
    %1411 = vmatprep.subr.mxu0 0.0
    %1412 = vmatpush1.msra.mxu0 0.0
    %1413 = vmatprep.subr.mxu0 0.0
    %1414 = vmatpush1.msra.mxu0 0.0
    %1415 = vmatprep.subr.mxu0 0.0
    %1416 = vmatpush1.msra.mxu0 0.0
    %1417 = vmatprep.subr.mxu0 0.0
    %1418 = vmatpush1.msra.mxu0 0.0
    %1419 = vmatprep.subr.mxu0 0.0
    %1420 = vmatpush1.msra.mxu0 0.0
    %1421 = vmatprep.subr.mxu0 0.0
    %1422 = vmatpush1.msra.mxu0 0.0
    %1423 = vmatprep.subr.mxu0 0.0
    %1424 = vmatpush1.msra.mxu0 0.0
    %1425 = vmatprep.subr.mxu0 0.0
    %1426 = vmatpush1.msra.mxu0 0.0
    %1427 = vmatprep.subr.mxu0 0.0
    %1428 = vmatpush1.msra.mxu0 0.0
    %1429 = vmatprep.subr.mxu0 0.0
    %1430 = vmatpush1.msra.mxu0 0.0
    %1431 = vmatprep.subr.mxu0 0.0
    %1432 = vmatpush1.msra.mxu0 0.0
    %1433 = vmatprep.subr.mxu0 0.0
    %1434 = vmatpush1.msra.mxu0 0.0
    %1435 = vmatprep.subr.mxu0 0.0
    %1436 = vmatpush1.msra.mxu0 0.0
    %1437 = vmatprep.subr.mxu0 0.0
    %1438 = vmatpush1.msra.mxu0 0.0
    %1439 = vmatprep.subr.mxu0 0.0
    %1440 = vmatpush1.msra.mxu0 0.0
    %1441 = vmatprep.subr.mxu0 0.0
    %1442 = vmatpush1.msra.mxu0 0.0
    %1443 = vmatprep.subr.mxu0 0.0
    %1444 = vmatpush1.msra.mxu0 0.0
    %1445 = vmatprep.subr.mxu0 0.0
    %1446 = vmatpush1.msra.mxu0 0.0
    %1447 = vmatprep.subr.mxu0 0.0
    %1448 = vmatpush1.msra.mxu0 0.0
    %1449 = vmatprep.subr.mxu0 0.0
    %1450 = vmatpush1.msra.mxu0 0.0
    %1451 = vmatprep.subr.mxu0 0.0
    %1452 = vmatpush1.msra.mxu0 0.0
    %1453 = vmatprep.subr.mxu0 0.0
    %1454 = vmatpush1.msra.mxu0 0.0
    %1455 = vmatprep.subr.mxu0 0.0
    %1456 = vmatpush1.msra.mxu0 0.0
    %1457 = vmatprep.subr.mxu0 0.0
    %1458 = vmatpush1.msra.mxu0 0.0
    %1459 = vmatprep.subr.mxu0 0.0
    %1460 = vmatpush1.msra.mxu0 0.0
    %1461 = vmatprep.subr.mxu0 0.0
    %1462 = vmatpush1.msra.mxu0 0.0
    %1463 = vmatprep.subr.mxu0 0.0
    %1464 = vmatpush1.msra.mxu0 0.0
    %1465 = vmatprep.subr.mxu0 0.0
    %1466 = vmatpush1.msra.mxu0 0.0
    %1467 = vmatprep.mubr.f32.mxu0 0.0
    %1468 = vmatmul.mubr.f32.gmra.mrb[0].mxu0 %v1401
    %v1469 = vpop.f32.mrb[0].mxu0
    %v1470 = vadd.f32 0.0, %v1469
    %v1471 = vpop.f32.mrb[0].mxu0
    %1472 = vdwg.mxu0
    %v1473 = vadd.f32 %v1164, %v1470
    %v1474 = vxor.u32 %v1473, 2147483648
    %v1475 = vmul.f32 %v1474, 1.442695
    %v1476 = vpow.pop %v1475
    %v1477 = vadd.f32 %v1476, 1.0
    %v1478 = vrcp.pop %v1477
    %v1479 = vmul.f32 1.0, %v1478
    %v1480 = vtanh.pop %v1473
    %v1481 = vmul.f32 %v1479, %v1391
    %1483 = vrot.lane.b32.xlu0 %v1480, 32
    %v1484 = vpop.permute.xlu0 %1483
    %v1486 = vmul.f32 %v1479, %v1484
    %1488 = vrot.lane.b32.xlu0 %v1486, 32
    %v1489 = vpop.permute.xlu0 %1488
    %v1491 = vadd.f32 %v1481, %v1489
    %v1492 = vtanh.pop %v1491
    %1494 = vrot.lane.b32.xlu0 %v1492, 32
    %v1495 = vpop.permute.xlu0 %1494
    %v1497 = vmul.f32 %v1479, %v1495
    %1499 = vrot.lane.b32.xlu0 %v1497, 64
    %v1500 = vpop.permute.xlu0 %1499
    %v1501 = vsel %vm257, %v1500, 0
    %1503 = vmatprep.subr.mxu0 0.0
    %1504 = vmatpush1.msra.mxu0 %v1074
    %1505 = vmatprep.subr.mxu0 0.0
    %1506 = vmatpush1.msra.mxu0 %v1075
    %1507 = vmatprep.subr.mxu0 0.0
    %1508 = vmatpush1.msra.mxu0 %v1076
    %1509 = vmatprep.subr.mxu0 0.0
    %1510 = vmatpush1.msra.mxu0 %v1077
    %1511 = vmatprep.subr.mxu0 0.0
    %1512 = vmatpush1.msra.mxu0 0.0
    %1513 = vmatprep.subr.mxu0 0.0
    %1514 = vmatpush1.msra.mxu0 0.0
    %1515 = vmatprep.subr.mxu0 0.0
    %1516 = vmatpush1.msra.mxu0 0.0
    %1517 = vmatprep.subr.mxu0 0.0
    %1518 = vmatpush1.msra.mxu0 0.0
    %1519 = vmatprep.subr.mxu0 0.0
    %1520 = vmatpush1.msra.mxu0 0.0
    %1521 = vmatprep.subr.mxu0 0.0
    %1522 = vmatpush1.msra.mxu0 0.0
    %1523 = vmatprep.subr.mxu0 0.0
    %1524 = vmatpush1.msra.mxu0 0.0
    %1525 = vmatprep.subr.mxu0 0.0
    %1526 = vmatpush1.msra.mxu0 0.0
    %1527 = vmatprep.subr.mxu0 0.0
    %1528 = vmatpush1.msra.mxu0 0.0
    %1529 = vmatprep.subr.mxu0 0.0
    %1530 = vmatpush1.msra.mxu0 0.0
    %1531 = vmatprep.subr.mxu0 0.0
    %1532 = vmatpush1.msra.mxu0 0.0
    %1533 = vmatprep.subr.mxu0 0.0
    %1534 = vmatpush1.msra.mxu0 0.0
    %1535 = vmatprep.subr.mxu0 0.0
    %1536 = vmatpush1.msra.mxu0 0.0
    %1537 = vmatprep.subr.mxu0 0.0
    %1538 = vmatpush1.msra.mxu0 0.0
    %1539 = vmatprep.subr.mxu0 0.0
    %1540 = vmatpush1.msra.mxu0 0.0
    %1541 = vmatprep.subr.mxu0 0.0
    %1542 = vmatpush1.msra.mxu0 0.0
    %1543 = vmatprep.subr.mxu0 0.0
    %1544 = vmatpush1.msra.mxu0 0.0
    %1545 = vmatprep.subr.mxu0 0.0
    %1546 = vmatpush1.msra.mxu0 0.0
    %1547 = vmatprep.subr.mxu0 0.0
    %1548 = vmatpush1.msra.mxu0 0.0
    %1549 = vmatprep.subr.mxu0 0.0
    %1550 = vmatpush1.msra.mxu0 0.0
    %1551 = vmatprep.subr.mxu0 0.0
    %1552 = vmatpush1.msra.mxu0 0.0
    %1553 = vmatprep.subr.mxu0 0.0
    %1554 = vmatpush1.msra.mxu0 0.0
    %1555 = vmatprep.subr.mxu0 0.0
    %1556 = vmatpush1.msra.mxu0 0.0
    %1557 = vmatprep.subr.mxu0 0.0
    %1558 = vmatpush1.msra.mxu0 0.0
    %1559 = vmatprep.subr.mxu0 0.0
    %1560 = vmatpush1.msra.mxu0 0.0
    %1561 = vmatprep.subr.mxu0 0.0
    %1562 = vmatpush1.msra.mxu0 0.0
    %1563 = vmatprep.subr.mxu0 0.0
    %1564 = vmatpush1.msra.mxu0 0.0
    %1565 = vmatprep.subr.mxu0 0.0
    %1566 = vmatpush1.msra.mxu0 0.0
    %1567 = vmatprep.mubr.f32.mxu0 0.0
    %1568 = vmatmul.mubr.f32.gmra.mrb[0].mxu0 %v1501
    %v1569 = vpop.f32.mrb[0].mxu0
    %v1570 = vadd.f32 0.0, %v1569
    %v1571 = vpop.f32.mrb[0].mxu0
    %1572 = vdwg.mxu0
    %v1573 = vadd.f32 %v1169, %v1570
    %v1574 = vxor.u32 %v1573, 2147483648
    %v1575 = vmul.f32 %v1574, 1.442695
    %v1576 = vpow.pop %v1575
    %v1577 = vadd.f32 %v1576, 1.0
    %v1578 = vrcp.pop %v1577
    %v1579 = vmul.f32 1.0, %v1578
    %v1580 = vtanh.pop %v1573
    %v1581 = vmul.f32 %v1579, %v1491
    %1583 = vrot.lane.b32.xlu0 %v1580, 32
    %v1584 = vpop.permute.xlu0 %1583
    %v1586 = vmul.f32 %v1579, %v1584
    %1588 = vrot.lane.b32.xlu0 %v1586, 32
    %v1589 = vpop.permute.xlu0 %1588
    %v1591 = vadd.f32 %v1581, %v1589
    %v1592 = vtanh.pop %v1591
    %1594 = vrot.lane.b32.xlu0 %v1592, 32
    %v1595 = vpop.permute.xlu0 %1594
    %v1597 = vmul.f32 %v1579, %v1595
    %1599 = vrot.lane.b32.xlu0 %v1597, 64
    %v1600 = vpop.permute.xlu0 %1599
    %v1601 = vsel %vm257, %v1600, 0
    %1603 = vmatprep.subr.mxu0 0.0
    %1604 = vmatpush1.msra.mxu0 %v1074
    %1605 = vmatprep.subr.mxu0 0.0
    %1606 = vmatpush1.msra.mxu0 %v1075
    %1607 = vmatprep.subr.mxu0 0.0
    %1608 = vmatpush1.msra.mxu0 %v1076
    %1609 = vmatprep.subr.mxu0 0.0
    %1610 = vmatpush1.msra.mxu0 %v1077
    %1611 = vmatprep.subr.mxu0 0.0
    %1612 = vmatpush1.msra.mxu0 0.0
    %1613 = vmatprep.subr.mxu0 0.0
    %1614 = vmatpush1.msra.mxu0 0.0
    %1615 = vmatprep.subr.mxu0 0.0
    %1616 = vmatpush1.msra.mxu0 0.0
    %1617 = vmatprep.subr.mxu0 0.0
    %1618 = vmatpush1.msra.mxu0 0.0
    %1619 = vmatprep.subr.mxu0 0.0
    %1620 = vmatpush1.msra.mxu0 0.0
    %1621 = vmatprep.subr.mxu0 0.0
    %1622 = vmatpush1.msra.mxu0 0.0
    %1623 = vmatprep.subr.mxu0 0.0
    %1624 = vmatpush1.msra.mxu0 0.0
    %1625 = vmatprep.subr.mxu0 0.0
    %1626 = vmatpush1.msra.mxu0 0.0
    %1627 = vmatprep.subr.mxu0 0.0
    %1628 = vmatpush1.msra.mxu0 0.0
    %1629 = vmatprep.subr.mxu0 0.0
    %1630 = vmatpush1.msra.mxu0 0.0
    %1631 = vmatprep.subr.mxu0 0.0
    %1632 = vmatpush1.msra.mxu0 0.0
    %1633 = vmatprep.subr.mxu0 0.0
    %1634 = vmatpush1.msra.mxu0 0.0
    %1635 = vmatprep.subr.mxu0 0.0
    %1636 = vmatpush1.msra.mxu0 0.0
    %1637 = vmatprep.subr.mxu0 0.0
    %1638 = vmatpush1.msra.mxu0 0.0
    %1639 = vmatprep.subr.mxu0 0.0
    %1640 = vmatpush1.msra.mxu0 0.0
    %1641 = vmatprep.subr.mxu0 0.0
    %1642 = vmatpush1.msra.mxu0 0.0
    %1643 = vmatprep.subr.mxu0 0.0
    %1644 = vmatpush1.msra.mxu0 0.0
    %1645 = vmatprep.subr.mxu0 0.0
    %1646 = vmatpush1.msra.mxu0 0.0
    %1647 = vmatprep.subr.mxu0 0.0
    %1648 = vmatpush1.msra.mxu0 0.0
    %1649 = vmatprep.subr.mxu0 0.0
    %1650 = vmatpush1.msra.mxu0 0.0
    %1651 = vmatprep.subr.mxu0 0.0
    %1652 = vmatpush1.msra.mxu0 0.0
    %1653 = vmatprep.subr.mxu0 0.0
    %1654 = vmatpush1.msra.mxu0 0.0
    %1655 = vmatprep.subr.mxu0 0.0
    %1656 = vmatpush1.msra.mxu0 0.0
    %1657 = vmatprep.subr.mxu0 0.0
    %1658 = vmatpush1.msra.mxu0 0.0
    %1659 = vmatprep.subr.mxu0 0.0
    %1660 = vmatpush1.msra.mxu0 0.0
    %1661 = vmatprep.subr.mxu0 0.0
    %1662 = vmatpush1.msra.mxu0 0.0
    %1663 = vmatprep.subr.mxu0 0.0
    %1664 = vmatpush1.msra.mxu0 0.0
    %1665 = vmatprep.subr.mxu0 0.0
    %1666 = vmatpush1.msra.mxu0 0.0
    %1667 = vmatprep.mubr.f32.mxu0 0.0
    %1668 = vmatmul.mubr.f32.gmra.mrb[0].mxu0 %v1601
    %v1669 = vpop.f32.mrb[0].mxu0
    %v1670 = vadd.f32 0.0, %v1669
    %v1671 = vpop.f32.mrb[0].mxu0
    %1672 = vdwg.mxu0
    %v1673 = vadd.f32 %v1174, %v1670
    %v1674 = vxor.u32 %v1673, 2147483648
    %v1675 = vmul.f32 %v1674, 1.442695
    %v1676 = vpow.pop %v1675
    %v1677 = vadd.f32 %v1676, 1.0
    %v1678 = vrcp.pop %v1677
    %v1679 = vmul.f32 1.0, %v1678
    %v1680 = vtanh.pop %v1673
    %v1681 = vmul.f32 %v1679, %v1591
    %1683 = vrot.lane.b32.xlu0 %v1680, 32
    %v1684 = vpop.permute.xlu0 %1683
    %v1686 = vmul.f32 %v1679, %v1684
    %1688 = vrot.lane.b32.xlu0 %v1686, 32
    %v1689 = vpop.permute.xlu0 %1688
    %v1691 = vadd.f32 %v1681, %v1689
    %v1692 = vtanh.pop %v1691
    %1694 = vrot.lane.b32.xlu0 %v1692, 32
    %v1695 = vpop.permute.xlu0 %1694
    %v1697 = vmul.f32 %v1679, %v1695
    %1699 = vrot.lane.b32.xlu0 %v1697, 64
    %v1700 = vpop.permute.xlu0 %1699
    %v1701 = vsel %vm257, %v1700, 0
    %1703 = vmatprep.subr.mxu0 0.0
    %1704 = vmatpush1.msra.mxu0 %v1074
    %1705 = vmatprep.subr.mxu0 0.0
    %1706 = vmatpush1.msra.mxu0 %v1075
    %1707 = vmatprep.subr.mxu0 0.0
    %1708 = vmatpush1.msra.mxu0 %v1076
    %1709 = vmatprep.subr.mxu0 0.0
    %1710 = vmatpush1.msra.mxu0 %v1077
    %1711 = vmatprep.subr.mxu0 0.0
    %1712 = vmatpush1.msra.mxu0 0.0
    %1713 = vmatprep.subr.mxu0 0.0
    %1714 = vmatpush1.msra.mxu0 0.0
    %1715 = vmatprep.subr.mxu0 0.0
    %1716 = vmatpush1.msra.mxu0 0.0
    %1717 = vmatprep.subr.mxu0 0.0
    %1718 = vmatpush1.msra.mxu0 0.0
    %1719 = vmatprep.subr.mxu0 0.0
    %1720 = vmatpush1.msra.mxu0 0.0
    %1721 = vmatprep.subr.mxu0 0.0
    %1722 = vmatpush1.msra.mxu0 0.0
    %1723 = vmatprep.subr.mxu0 0.0
    %1724 = vmatpush1.msra.mxu0 0.0
    %1725 = vmatprep.subr.mxu0 0.0
    %1726 = vmatpush1.msra.mxu0 0.0
    %1727 = vmatprep.subr.mxu0 0.0
    %1728 = vmatpush1.msra.mxu0 0.0
    %1729 = vmatprep.subr.mxu0 0.0
    %1730 = vmatpush1.msra.mxu0 0.0
    %1731 = vmatprep.subr.mxu0 0.0
    %1732 = vmatpush1.msra.mxu0 0.0
    %1733 = vmatprep.subr.mxu0 0.0
    %1734 = vmatpush1.msra.mxu0 0.0
    %1735 = vmatprep.subr.mxu0 0.0
    %1736 = vmatpush1.msra.mxu0 0.0
    %1737 = vmatprep.subr.mxu0 0.0
    %1738 = vmatpush1.msra.mxu0 0.0
    %1739 = vmatprep.subr.mxu0 0.0
    %1740 = vmatpush1.msra.mxu0 0.0
    %1741 = vmatprep.subr.mxu0 0.0
    %1742 = vmatpush1.msra.mxu0 0.0
    %1743 = vmatprep.subr.mxu0 0.0
    %1744 = vmatpush1.msra.mxu0 0.0
    %1745 = vmatprep.subr.mxu0 0.0
    %1746 = vmatpush1.msra.mxu0 0.0
    %1747 = vmatprep.subr.mxu0 0.0
    %1748 = vmatpush1.msra.mxu0 0.0
    %1749 = vmatprep.subr.mxu0 0.0
    %1750 = vmatpush1.msra.mxu0 0.0
    %1751 = vmatprep.subr.mxu0 0.0
    %1752 = vmatpush1.msra.mxu0 0.0
    %1753 = vmatprep.subr.mxu0 0.0
    %1754 = vmatpush1.msra.mxu0 0.0
    %1755 = vmatprep.subr.mxu0 0.0
    %1756 = vmatpush1.msra.mxu0 0.0
    %1757 = vmatprep.subr.mxu0 0.0
    %1758 = vmatpush1.msra.mxu0 0.0
    %1759 = vmatprep.subr.mxu0 0.0
    %1760 = vmatpush1.msra.mxu0 0.0
    %1761 = vmatprep.subr.mxu0 0.0
    %1762 = vmatpush1.msra.mxu0 0.0
    %1763 = vmatprep.subr.mxu0 0.0
    %1764 = vmatpush1.msra.mxu0 0.0
    %1765 = vmatprep.subr.mxu0 0.0
    %1766 = vmatpush1.msra.mxu0 0.0
    %1767 = vmatprep.mubr.f32.mxu0 0.0
    %1768 = vmatmul.mubr.f32.gmra.mrb[0].mxu0 %v1701
    %v1769 = vpop.f32.mrb[0].mxu0
    %v1770 = vadd.f32 0.0, %v1769
    %v1771 = vpop.f32.mrb[0].mxu0
    %1772 = vdwg.mxu0
    %v1773 = vadd.f32 %v1179, %v1770
    %v1774 = vxor.u32 %v1773, 2147483648
    %v1775 = vmul.f32 %v1774, 1.442695
    %v1776 = vpow.pop %v1775
    %v1777 = vadd.f32 %v1776, 1.0
    %v1778 = vrcp.pop %v1777
    %v1779 = vmul.f32 1.0, %v1778
    %v1780 = vtanh.pop %v1773
    %v1781 = vmul.f32 %v1779, %v1691
    %1783 = vrot.lane.b32.xlu0 %v1780, 32
    %v1784 = vpop.permute.xlu0 %1783
    %v1786 = vmul.f32 %v1779, %v1784
    %1788 = vrot.lane.b32.xlu0 %v1786, 32
    %v1789 = vpop.permute.xlu0 %1788
    %v1791 = vadd.f32 %v1781, %v1789
    %v1792 = vtanh.pop %v1791
    %1794 = vrot.lane.b32.xlu0 %v1792, 32
    %v1795 = vpop.permute.xlu0 %1794
    %v1797 = vmul.f32 %v1779, %v1795
    %1799 = vrot.lane.b32.xlu0 %v1797, 64
    %v1800 = vpop.permute.xlu0 %1799
    %v1801 = vsel %vm257, %v1800, 0
    %1803 = vmatprep.subr.mxu0 0.0
    %1804 = vmatpush1.msra.mxu0 %v1074
    %1805 = vmatprep.subr.mxu0 0.0
    %1806 = vmatpush1.msra.mxu0 %v1075
    %1807 = vmatprep.subr.mxu0 0.0
    %1808 = vmatpush1.msra.mxu0 %v1076
    %1809 = vmatprep.subr.mxu0 0.0
    %1810 = vmatpush1.msra.mxu0 %v1077
    %1811 = vmatprep.subr.mxu0 0.0
    %1812 = vmatpush1.msra.mxu0 0.0
    %1813 = vmatprep.subr.mxu0 0.0
    %1814 = vmatpush1.msra.mxu0 0.0
    %1815 = vmatprep.subr.mxu0 0.0
    %1816 = vmatpush1.msra.mxu0 0.0
    %1817 = vmatprep.subr.mxu0 0.0
    %1818 = vmatpush1.msra.mxu0 0.0
    %1819 = vmatprep.subr.mxu0 0.0
    %1820 = vmatpush1.msra.mxu0 0.0
    %1821 = vmatprep.subr.mxu0 0.0
    %1822 = vmatpush1.msra.mxu0 0.0
    %1823 = vmatprep.subr.mxu0 0.0
    %1824 = vmatpush1.msra.mxu0 0.0
    %1825 = vmatprep.subr.mxu0 0.0
    %1826 = vmatpush1.msra.mxu0 0.0
    %1827 = vmatprep.subr.mxu0 0.0
    %1828 = vmatpush1.msra.mxu0 0.0
    %1829 = vmatprep.subr.mxu0 0.0
    %1830 = vmatpush1.msra.mxu0 0.0
    %1831 = vmatprep.subr.mxu0 0.0
    %1832 = vmatpush1.msra.mxu0 0.0
    %1833 = vmatprep.subr.mxu0 0.0
    %1834 = vmatpush1.msra.mxu0 0.0
    %1835 = vmatprep.subr.mxu0 0.0
    %1836 = vmatpush1.msra.mxu0 0.0
    %1837 = vmatprep.subr.mxu0 0.0
    %1838 = vmatpush1.msra.mxu0 0.0
    %1839 = vmatprep.subr.mxu0 0.0
    %1840 = vmatpush1.msra.mxu0 0.0
    %1841 = vmatprep.subr.mxu0 0.0
    %1842 = vmatpush1.msra.mxu0 0.0
    %1843 = vmatprep.subr.mxu0 0.0
    %1844 = vmatpush1.msra.mxu0 0.0
    %1845 = vmatprep.subr.mxu0 0.0
    %1846 = vmatpush1.msra.mxu0 0.0
    %1847 = vmatprep.subr.mxu0 0.0
    %1848 = vmatpush1.msra.mxu0 0.0
    %1849 = vmatprep.subr.mxu0 0.0
    %1850 = vmatpush1.msra.mxu0 0.0
    %1851 = vmatprep.subr.mxu0 0.0
    %1852 = vmatpush1.msra.mxu0 0.0
    %1853 = vmatprep.subr.mxu0 0.0
    %1854 = vmatpush1.msra.mxu0 0.0
    %1855 = vmatprep.subr.mxu0 0.0
    %1856 = vmatpush1.msra.mxu0 0.0
    %1857 = vmatprep.subr.mxu0 0.0
    %1858 = vmatpush1.msra.mxu0 0.0
    %1859 = vmatprep.subr.mxu0 0.0
    %1860 = vmatpush1.msra.mxu0 0.0
    %1861 = vmatprep.subr.mxu0 0.0
    %1862 = vmatpush1.msra.mxu0 0.0
    %1863 = vmatprep.subr.mxu0 0.0
    %1864 = vmatpush1.msra.mxu0 0.0
    %1865 = vmatprep.subr.mxu0 0.0
    %1866 = vmatpush1.msra.mxu0 0.0
    %1867 = vmatprep.mubr.f32.mxu0 0.0
    %1868 = vmatmul.mubr.f32.gmra.mrb[0].mxu0 %v1801
    %v1869 = vpop.f32.mrb[0].mxu0
    %v1870 = vadd.f32 0.0, %v1869
    %v1871 = vpop.f32.mrb[0].mxu0
    %1872 = vdwg.mxu0
    %v1873 = vadd.f32 %v1184, %v1870
    %v1874 = vxor.u32 %v1873, 2147483648
    %v1875 = vmul.f32 %v1874, 1.442695
    %v1876 = vpow.pop %v1875
    %v1877 = vadd.f32 %v1876, 1.0
    %v1878 = vrcp.pop %v1877
    %v1879 = vmul.f32 1.0, %v1878
    %v1880 = vtanh.pop %v1873
    %v1881 = vmul.f32 %v1879, %v1791
    %1883 = vrot.lane.b32.xlu0 %v1880, 32
    %v1884 = vpop.permute.xlu0 %1883
    %v1886 = vmul.f32 %v1879, %v1884
    %1888 = vrot.lane.b32.xlu0 %v1886, 32
    %v1889 = vpop.permute.xlu0 %1888
    %v1891 = vadd.f32 %v1881, %v1889
    %v1892 = vtanh.pop %v1891
    %1894 = vrot.lane.b32.xlu0 %v1892, 32
    %v1895 = vpop.permute.xlu0 %1894
    %v1897 = vmul.f32 %v1879, %v1895
    %1899 = vrot.lane.b32.xlu0 %v1897, 64
    %v1900 = vpop.permute.xlu0 %1899
    %v1901 = vsel %vm257, %v1900, 0
    %1903 = vmatprep.subr.mxu0 0.0
    %1904 = vmatpush1.msra.mxu0 %v1074
    %1905 = vmatprep.subr.mxu0 0.0
    %1906 = vmatpush1.msra.mxu0 %v1075
    %1907 = vmatprep.subr.mxu0 0.0
    %1908 = vmatpush1.msra.mxu0 %v1076
    %1909 = vmatprep.subr.mxu0 0.0
    %1910 = vmatpush1.msra.mxu0 %v1077
    %1911 = vmatprep.subr.mxu0 0.0
    %1912 = vmatpush1.msra.mxu0 0.0
    %1913 = vmatprep.subr.mxu0 0.0
    %1914 = vmatpush1.msra.mxu0 0.0
    %1915 = vmatprep.subr.mxu0 0.0
    %1916 = vmatpush1.msra.mxu0 0.0
    %1917 = vmatprep.subr.mxu0 0.0
    %1918 = vmatpush1.msra.mxu0 0.0
    %1919 = vmatprep.subr.mxu0 0.0
    %1920 = vmatpush1.msra.mxu0 0.0
    %1921 = vmatprep.subr.mxu0 0.0
    %1922 = vmatpush1.msra.mxu0 0.0
    %1923 = vmatprep.subr.mxu0 0.0
    %1924 = vmatpush1.msra.mxu0 0.0
    %1925 = vmatprep.subr.mxu0 0.0
    %1926 = vmatpush1.msra.mxu0 0.0
    %1927 = vmatprep.subr.mxu0 0.0
    %1928 = vmatpush1.msra.mxu0 0.0
    %1929 = vmatprep.subr.mxu0 0.0
    %1930 = vmatpush1.msra.mxu0 0.0
    %1931 = vmatprep.subr.mxu0 0.0
    %1932 = vmatpush1.msra.mxu0 0.0
    %1933 = vmatprep.subr.mxu0 0.0
    %1934 = vmatpush1.msra.mxu0 0.0
    %1935 = vmatprep.subr.mxu0 0.0
    %1936 = vmatpush1.msra.mxu0 0.0
    %1937 = vmatprep.subr.mxu0 0.0
    %1938 = vmatpush1.msra.mxu0 0.0
    %1939 = vmatprep.subr.mxu0 0.0
    %1940 = vmatpush1.msra.mxu0 0.0
    %1941 = vmatprep.subr.mxu0 0.0
    %1942 = vmatpush1.msra.mxu0 0.0
    %1943 = vmatprep.subr.mxu0 0.0
    %1944 = vmatpush1.msra.mxu0 0.0
    %1945 = vmatprep.subr.mxu0 0.0
    %1946 = vmatpush1.msra.mxu0 0.0
    %1947 = vmatprep.subr.mxu0 0.0
    %1948 = vmatpush1.msra.mxu0 0.0
    %1949 = vmatprep.subr.mxu0 0.0
    %1950 = vmatpush1.msra.mxu0 0.0
    %1951 = vmatprep.subr.mxu0 0.0
    %1952 = vmatpush1.msra.mxu0 0.0
    %1953 = vmatprep.subr.mxu0 0.0
    %1954 = vmatpush1.msra.mxu0 0.0
    %1955 = vmatprep.subr.mxu0 0.0
    %1956 = vmatpush1.msra.mxu0 0.0
    %1957 = vmatprep.subr.mxu0 0.0
    %1958 = vmatpush1.msra.mxu0 0.0
    %1959 = vmatprep.subr.mxu0 0.0
    %1960 = vmatpush1.msra.mxu0 0.0
    %1961 = vmatprep.subr.mxu0 0.0
    %1962 = vmatpush1.msra.mxu0 0.0
    %1963 = vmatprep.subr.mxu0 0.0
    %1964 = vmatpush1.msra.mxu0 0.0
    %1965 = vmatprep.subr.mxu0 0.0
    %1966 = vmatpush1.msra.mxu0 0.0
    %1967 = vmatprep.mubr.f32.mxu0 0.0
    %1968 = vmatmul.mubr.f32.gmra.mrb[0].mxu0 %v1901
    %v1969 = vpop.f32.mrb[0].mxu0
    %v1970 = vadd.f32 0.0, %v1969
    %v1971 = vpop.f32.mrb[0].mxu0
    %1972 = vdwg.mxu0
    %v1973 = vadd.f32 %v1189, %v1970
    %v1974 = vxor.u32 %v1973, 2147483648
    %v1975 = vmul.f32 %v1974, 1.442695
    %v1976 = vpow.pop %v1975
    %v1977 = vadd.f32 %v1976, 1.0
    %v1978 = vrcp.pop %v1977
    %v1979 = vmul.f32 1.0, %v1978
    %v1980 = vtanh.pop %v1973
    %v1981 = vmul.f32 %v1979, %v1891
    %1983 = vrot.lane.b32.xlu0 %v1980, 32
    %v1984 = vpop.permute.xlu0 %1983
    %v1986 = vmul.f32 %v1979, %v1984
    %1988 = vrot.lane.b32.xlu0 %v1986, 32
    %v1989 = vpop.permute.xlu0 %1988
    %v1991 = vadd.f32 %v1981, %v1989
    %v1992 = vtanh.pop %v1991
    %1994 = vrot.lane.b32.xlu0 %v1992, 32
    %v1995 = vpop.permute.xlu0 %1994
    %v1997 = vmul.f32 %v1979, %v1995
    %1999 = vrot.lane.b32.xlu0 %v1997, 64
    %v2000 = vpop.permute.xlu0 %1999
    %2002 = vst.msk [vmem:[%s1192] sm:$0xff] %vm257, %v2000
    %2004 = vrot.lane.b32.xlu0 %v1991, 96
    %v2005 = vpop.permute.xlu0 %2004
    %2007 = vst.msk [vmem:[%s1194] sm:$0xff] %vm257, %v2005
    // Predicated region
    $region54: #{tpu_custom_call.1} parent=1 // pred_check
      %p2008 = pneg %p95
    $region55: #{tpu_custom_call.1} parent=1 // pred_check_branch
      %2010 = sbr.rel (%p2008) target = $region57
    $region56: #{tpu_custom_call.1} parent=1 // pred_region
      %v2011 = vld [vmem:[%s1192] sm:$0xff]
      %2012 = vst.msk [vmem:[#allocation13] sm:$0xff] %vm257, %v2011
    $region57: #{tpu_custom_call.1} parent=1 // pred_fallthru
      _
    // Predicated region
    $region58: #{tpu_custom_call.1} parent=1 // pred_check
      _
    $region59: #{tpu_custom_call.1} parent=1 // pred_check_branch
      %2014 = sbr.rel (0) target = $region61
    $region60: #{tpu_custom_call.1} parent=1 // pred_region
      %s2016 = ssub.s32 128, 128
      %2017 = vsyncadd [#allocation6], %s2016
      %s2019 = sshll.u32 [#allocation13], 4
      %s2020 = int_to_ptr.vmem [resolvable:$true] %s2019
      %2022 = dma.vmem_to_hbm [thread:$0]  %s2020, 128, %s7, [#allocation6]
    $region61: #{tpu_custom_call.1} parent=1 // pred_fallthru
      _
    // Predicated region
    $region62: #{tpu_custom_call.1} parent=1 // pred_check
      _
    $region63: #{tpu_custom_call.1} parent=1 // pred_check_branch
      %2024 = sbr.rel (0) target = $region65
    $region64: #{tpu_custom_call.1} parent=1 // pred_region
      %2025 = dma.done [#allocation6], 128
    $region65: #{tpu_custom_call.1} parent=1 // pred_fallthru
      _
    %2026 = vsyncpa [#allocation5], 1
    %2027 = vsyncpa [#allocation8], 1
    %2028 = vsyncpa [#allocation11], 1
    %2029 = vsyncpa [#allocation6], 1

</llo_original>
